<compile_context>
chip_gen: v6e
topology: v6e:2x2x1
jax: 0.10.0
libtpu: 0.0.40
codegen_flags: <defaults>
</compile_context>

<pallas_src>
import functools

import jax
import jax.numpy as jnp
from jax.experimental import pallas as pl
from jax.experimental.pallas import tpu as pltpu

D_IN = 512          # encoder input features
D_HID = 440         # real hidden width of Linear(512, 440)
H_PAD = 512         # hidden width padded to a multiple of 128
Z_DIM = 2           # real latent dim per head
Z_PAD = 128         # latent head width padded to one full lane group
OUT_SUB = 8         # sublane rows of the per-chunk output block ((8,128) aligned)


def _softplus(x):
    # numerically stable softplus, matches F.softplus
    return jnp.maximum(x, 0.0) + jnp.log1p(jnp.exp(-jnp.abs(x)))


# ----------------------------------------------------------------------------
# Fused kernel: two encoders + JS divergence, accumulated over the batch grid.
# Grid: (P parallel chunks, n_steps accumulation steps per chunk).
# ----------------------------------------------------------------------------
def js_kernel(x1_ref, x2_ref,
              w1a_ref, b1a_ref, w1h_ref, b1h_ref,
              w2a_ref, b2a_ref, w2h_ref, b2h_ref,
              out_ref):
    # out_ref: (OUT_SUB, Z_PAD) accumulator, resident across the inner
    # ("arbitrary") axis for this parallel chunk.
    @pl.when(pl.program_id(1) == 0)
    def _():
        out_ref[...] = jnp.zeros_like(out_ref)

    def encode(x_ref, wa_ref, ba_ref, wh_ref, bh_ref):
        x = x_ref[...].astype(jnp.bfloat16)           # no-op if input already bf16
        h = jnp.dot(x, wa_ref[...], preferred_element_type=jnp.float32) + ba_ref[...]
        h = jnp.maximum(h, 0.0).astype(jnp.bfloat16)
        o = jnp.dot(h, wh_ref[...], preferred_element_type=jnp.float32) + bh_ref[...]
        mu = o[:, :Z_PAD]                             # lanes [0,128): mu head
        sigma = _softplus(o[:, Z_PAD:]) + 1e-6        # lanes [128,256): sigma head
        return mu, sigma

    mu1, s1 = encode(x1_ref, w1a_ref, b1a_ref, w1h_ref, b1h_ref)
    mu2, s2 = encode(x2_ref, w2a_ref, b2a_ref, w2h_ref, b2h_ref)

    # JS to the mixture, folded to a single log + approx reciprocals:
    #   js = 0.5*log(s_m^2/(s1*s2)) + 0.25*(s1^2 + s2^2 + 2*d^2)/s_m^2 - 0.5
    # with d = mu1 - mu_m = 0.5*(mu1 - mu2)  (d1^2 == d2^2).
    s_m = 0.5 * (s1 + s2)
    d = 0.5 * (mu1 - mu2)

    sm2 = s_m * s_m
    inv_sm2 = pl.reciprocal(sm2, approx=True)
    log_term = jnp.log(sm2 * pl.reciprocal(s1 * s2, approx=True))
    quad = (s1 * s1 + s2 * s2 + 2.0 * (d * d)) * inv_sm2
    js = 0.5 * log_term + 0.25 * quad - 0.5            # (tb, Z_PAD)

    # Explicitly zero the padded latent lanes: robust to padding choices and to
    # the approx-reciprocal drift on padded lanes.
    lane = jax.lax.broadcasted_iota(jnp.int32, js.shape, 1)
    js = jnp.where(lane < Z_DIM, js, 0.0)

    # Per-lane batch sum -> sublane 0 of the resident accumulator block.
    out_ref[0:1, :] += jnp.sum(js, axis=0, keepdims=True)


# ----------------------------------------------------------------------------
# Wrapper
# ----------------------------------------------------------------------------
def _auto_tile(batch, cap=1024):
    """Largest multiple of 8 that divides `batch`, capped at `cap`."""
    best = None
    t = 8
    while t <= min(batch, cap):
        if batch % t == 0:
            best = t
        t += 8
    return best if best is not None else batch   # tiny/odd batches: one full block


@functools.partial(jax.jit, static_argnames=("batch_tile",))
def ambiguity_js_forward(x1, x2, kparams, *, batch_tile=None):
    B = x1.shape[0]
    if batch_tile is None:
        tb = _auto_tile(B)
    else:
        if B % batch_tile != 0 or (batch_tile % 8 != 0 and batch_tile != B):
            raise ValueError(
                f"batch_tile={batch_tile} must divide B={B} and be a multiple of 8")
        tb = batch_tile

    n_blocks = B // tb
    # Split the batch across both TensorCores on v7x; no-op on v5e/v6e.
    P = 2 if (n_blocks % 2 == 0 and n_blocks >= 2) else 1
    n_steps = n_blocks // P

    def x_spec():
        return pl.BlockSpec((tb, D_IN), lambda p, i: (p * n_steps + i, 0))

    def w_spec(shape):
        # Constant block index -> weights/biases stay resident in VMEM.
        return pl.BlockSpec(shape, lambda p, i: (0, 0))

    out = pl.pallas_call(
        js_kernel,
        out_shape=jax.ShapeDtypeStruct((OUT_SUB, P * Z_PAD), jnp.float32),
        grid=(P, n_steps),
        in_specs=[
            x_spec(), x_spec(),
            w_spec((D_IN, H_PAD)), w_spec((1, H_PAD)),
            w_spec((H_PAD, 2 * Z_PAD)), w_spec((1, 2 * Z_PAD)),
            w_spec((D_IN, H_PAD)), w_spec((1, H_PAD)),
            w_spec((H_PAD, 2 * Z_PAD)), w_spec((1, 2 * Z_PAD)),
        ],
        out_specs=pl.BlockSpec((OUT_SUB, Z_PAD), lambda p, i: (0, p)),
        compiler_params=pltpu.CompilerParams(
            dimension_semantics=("parallel", "arbitrary")),
    )(x1, x2, *kparams)

    # Tiny final reduction + mean over the FULL batch size.
    return jnp.sum(out) / B


# ----------------------------------------------------------------------------
# Parameter init (PyTorch-style uniform(-1/sqrt(fan_in), +1/sqrt(fan_in)))
# ----------------------------------------------------------------------------
def init_params(key):
    def linear(k, fan_in, fan_out):
        k1, k2 = jax.random.split(k)
        bound = 1.0 / (fan_in ** 0.5)
        w = jax.random.uniform(k1, (fan_in, fan_out), jnp.float32, -bound, bound)
        b = jax.random.uniform(k2, (1, fan_out), jnp.float32, -bound, bound)
        return w, b

    keys = jax.random.split(key, 4)
    e1_w1, e1_b1 = linear(keys[0], D_IN, D_HID)
    e1_w2, e1_b2 = linear(keys[1], D_HID, 2 * Z_DIM)
    e2_w1, e2_b1 = linear(keys[2], D_IN, D_HID)
    e2_w2, e2_b2 = linear(keys[3], D_HID, 2 * Z_DIM)
    return {
        "e1_w1": e1_w1, "e1_b1": e1_b1, "e1_w2": e1_w2, "e1_b2": e1_b2,
        "e2_w1": e2_w1, "e2_b1": e2_b1, "e2_w2": e2_w2, "e2_b2": e2_b2,
    }


def prepare_kernel_params(p):
    """Zero-pad to lane-dense shapes and cast the big weights to bf16."""
    def pad_encoder(w1, b1, w2, b2):
        w1p = jnp.zeros((D_IN, H_PAD), jnp.float32).at[:, :D_HID].set(w1)
        b1p = jnp.zeros((1, H_PAD), jnp.float32).at[:, :D_HID].set(b1)
        w2p = jnp.zeros((H_PAD, 2 * Z_PAD), jnp.float32)
        w2p = w2p.at[:D_HID, :Z_DIM].set(w2[:, :Z_DIM])                  # mu head
        w2p = w2p.at[:D_HID, Z_PAD:Z_PAD + Z_DIM].set(w2[:, Z_DIM:])     # sigma head
        b2p = jnp.zeros((1, 2 * Z_PAD), jnp.float32)
        b2p = b2p.at[:, :Z_DIM].set(b2[:, :Z_DIM])
        b2p = b2p.at[:, Z_PAD:Z_PAD + Z_DIM].set(b2[:, Z_DIM:])
        return (w1p.astype(jnp.bfloat16), b1p,
                w2p.astype(jnp.bfloat16), b2p)

    e1 = pad_encoder(p["e1_w1"], p["e1_b1"], p["e1_w2"], p["e1_b2"])
    e2 = pad_encoder(p["e2_w1"], p["e2_b1"], p["e2_w2"], p["e2_b2"])
    return e1 + e2   # (w1a, b1a, w1h, b1h, w2a, b2a, w2h, b2h)


# ----------------------------------------------------------------------------
# Pure-JAX reference (f32, unpadded) for sanity checking only
# ----------------------------------------------------------------------------
def reference(x1, x2, p):
    def enc(x, w1, b1, w2, b2):
        h = jnp.maximum(x @ w1 + b1, 0.0)
        o = h @ w2 + b2
        return o[:, :Z_DIM], jax.nn.softplus(o[:, Z_DIM:]) + 1e-6

    def kld(mu_a, s_a, mu_b, s_b):
        kl = 0.5 * (2 * jnp.log(s_b) - 2 * jnp.log(s_a)
                    + (s_a ** 2 + (mu_a - mu_b) ** 2) / s_b ** 2 - 1)
        return jnp.sum(kl, axis=-1)

    mu1, s1 = enc(x1, p["e1_w1"], p["e1_b1"], p["e1_w2"], p["e1_b2"])
    mu2, s2 = enc(x2, p["e2_w1"], p["e2_b1"], p["e2_w2"], p["e2_b2"])
    mu_m = 0.5 * (mu1 + mu2)
    s_m = 0.5 * (s1 + s2)
    js = 0.5 * (kld(mu1, s1, mu_m, s_m) + kld(mu2, s2, mu_m, s_m))
    return jnp.mean(js)


if __name__ == "__main__":
    key = jax.random.PRNGKey(0)
    kp_key, k1, k2 = jax.random.split(key, 3)
    params = init_params(kp_key)
    kparams = prepare_kernel_params(params)

    # Small-shape check (single block, grid (1, 1)).
    B = 8
    x_modal1 = jax.random.normal(k1, (B, D_IN), jnp.float32)
    x_modal2 = jax.random.normal(k2, (B, D_IN), jnp.float32)
    loss = ambiguity_js_forward(x_modal1, x_modal2, kparams)
    jax.block_until_ready(loss)
    loss_ref = reference(x_modal1, x_modal2, params)
    assert loss.shape == ()
    assert jnp.allclose(loss, loss_ref, rtol=5e-2, atol=5e-2), (loss, loss_ref)

    # Tiled + dual-TensorCore path (grid (2, 2), tb=16) on a slightly larger batch.
    k3, k4 = jax.random.split(jax.random.PRNGKey(1))
    B2 = 64
    y1 = jax.random.normal(k3, (B2, D_IN), jnp.float32)
    y2 = jax.random.normal(k4, (B2, D_IN), jnp.float32)
    loss2 = ambiguity_js_forward(y1, y2, kparams, batch_tile=16)
    jax.block_until_ready(loss2)
    loss2_ref = reference(y1, y2, params)
    assert jnp.allclose(loss2, loss2_ref, rtol=5e-2, atol=5e-2), (loss2, loss2_ref)

    # TODO(synk): for very large production batches, pass bf16 activations and
    # (optionally) a larger batch_tile; the auto tile (<=1024 rows) is sized to
    # double-buffer within v7x's 32 MiB default scoped VMEM.
    print("KERNEL_OK")
</pallas_src>

<mosaic_0001>
module attributes {stable_mosaic.version = 11 : i64} {
  func.func @js_kernel(%arg0: i32, %arg1: i32, %arg2: memref<8x512xf32, #tpu.memory_space<vmem>>, %arg3: memref<8x512xf32, #tpu.memory_space<vmem>>, %arg4: memref<512x512xbf16, #tpu.memory_space<vmem>>, %arg5: memref<1x512xf32, #tpu.memory_space<vmem>>, %arg6: memref<512x256xbf16, #tpu.memory_space<vmem>>, %arg7: memref<1x256xf32, #tpu.memory_space<vmem>>, %arg8: memref<512x512xbf16, #tpu.memory_space<vmem>>, %arg9: memref<1x512xf32, #tpu.memory_space<vmem>>, %arg10: memref<512x256xbf16, #tpu.memory_space<vmem>>, %arg11: memref<1x256xf32, #tpu.memory_space<vmem>>, %arg12: memref<8x128xf32, #tpu.memory_space<vmem>>) attributes {dimension_semantics = [#tpu.dimension_semantics<parallel>, #tpu.dimension_semantics<arbitrary>], iteration_bounds = array<i64: 1, 1>, scalar_prefetch = 0 : i64, scratch_operands = 0 : i64, tpu.core_type = #tpu.core_type<tc>, window_params = [{transform_indices = @transform_0, window_bounds = array<i64: 8, 512>}, {transform_indices = @transform_1, window_bounds = array<i64: 8, 512>}, {pipeline_mode = #tpu.pipeline_mode<synchronous>, transform_indices = @transform_2, window_bounds = array<i64: 512, 512>}, {pipeline_mode = #tpu.pipeline_mode<synchronous>, transform_indices = @transform_3, window_bounds = array<i64: 1, 512>}, {pipeline_mode = #tpu.pipeline_mode<synchronous>, transform_indices = @transform_4, window_bounds = array<i64: 512, 256>}, {pipeline_mode = #tpu.pipeline_mode<synchronous>, transform_indices = @transform_5, window_bounds = array<i64: 1, 256>}, {pipeline_mode = #tpu.pipeline_mode<synchronous>, transform_indices = @transform_6, window_bounds = array<i64: 512, 512>}, {pipeline_mode = #tpu.pipeline_mode<synchronous>, transform_indices = @transform_7, window_bounds = array<i64: 1, 512>}, {pipeline_mode = #tpu.pipeline_mode<synchronous>, transform_indices = @transform_8, window_bounds = array<i64: 512, 256>}, {pipeline_mode = #tpu.pipeline_mode<synchronous>, transform_indices = @transform_9, window_bounds = array<i64: 1, 256>}, {transform_indices = @transform_10, window_bounds = array<i64: 8, 128>}]} {
    %c0_i32 = arith.constant 0 : i32
    %0 = arith.cmpi eq, %arg1, %c0_i32 : i32
    %1 = arith.extui %0 : i1 to i32
    %c0_i32_0 = arith.constant 0 : i32
    %2 = arith.cmpi ne, %1, %c0_i32_0 : i32
    scf.if %2 {
      %cst_43 = arith.constant 0.000000e+00 : f32
      %94 = vector.broadcast %cst_43 : f32 to vector<8x128xf32>
      %c0_44 = arith.constant 0 : index
      %c0_45 = arith.constant 0 : index
      %95 = vector.load %arg12[%c0_44, %c0_45] : memref<8x128xf32, #tpu.memory_space<vmem>>, vector<8x128xf32>
      tpu.vector_store %arg12[%c0_44, %c0_45], %94 {strides = array<i32>} : memref<8x128xf32, #tpu.memory_space<vmem>>, vector<8x128xf32>,
    } else {
    }
    %c0 = arith.constant 0 : index
    %c0_1 = arith.constant 0 : index
    %3 = vector.load %arg2[%c0, %c0_1] : memref<8x512xf32, #tpu.memory_space<vmem>>, vector<8x512xf32>
    %4 = arith.truncf %3 : vector<8x512xf32> to vector<8x512xbf16>
    %c0_2 = arith.constant 0 : index
    %c0_3 = arith.constant 0 : index
    %5 = vector.load %arg4[%c0_2, %c0_3] : memref<512x512xbf16, #tpu.memory_space<vmem>>, vector<512x512xbf16>
    %cst = arith.constant dense<0.000000e+00> : vector<8x512xf32>
    %6 = tpu.matmul %4, %5, %cst {dimension_numbers = #tpu.dot_dimension_numbers<[1], [0], [0], [1], [0, 0, 1, 1], [], []>} : vector<8x512xbf16>, vector<512x512xbf16>, vector<8x512xf32> -> vector<8x512xf32>
    %c0_4 = arith.constant 0 : index
    %c0_5 = arith.constant 0 : index
    %7 = vector.load %arg5[%c0_4, %c0_5] : memref<1x512xf32, #tpu.memory_space<vmem>>, vector<1x512xf32>
    %8 = vector.broadcast %7 : vector<1x512xf32> to vector<8x512xf32>
    %9 = arith.addf %6, %8 : vector<8x512xf32>
    %cst_6 = arith.constant 0.000000e+00 : f32
    %10 = vector.broadcast %cst_6 : f32 to vector<8x512xf32>
    %11 = arith.maximumf %9, %10 : vector<8x512xf32>
    %12 = arith.truncf %11 : vector<8x512xf32> to vector<8x512xbf16>
    %c0_7 = arith.constant 0 : index
    %c0_8 = arith.constant 0 : index
    %13 = vector.load %arg6[%c0_7, %c0_8] : memref<512x256xbf16, #tpu.memory_space<vmem>>, vector<512x256xbf16>
    %cst_9 = arith.constant dense<0.000000e+00> : vector<8x256xf32>
    %14 = tpu.matmul %12, %13, %cst_9 {dimension_numbers = #tpu.dot_dimension_numbers<[1], [0], [0], [1], [0, 0, 1, 1], [], []>} : vector<8x512xbf16>, vector<512x256xbf16>, vector<8x256xf32> -> vector<8x256xf32>
    %c0_10 = arith.constant 0 : index
    %c0_11 = arith.constant 0 : index
    %15 = vector.load %arg7[%c0_10, %c0_11] : memref<1x256xf32, #tpu.memory_space<vmem>>, vector<1x256xf32>
    %16 = vector.broadcast %15 : vector<1x256xf32> to vector<8x256xf32>
    %17 = arith.addf %14, %16 : vector<8x256xf32>
    %18 = vector.extract_strided_slice %17 {offsets = [0, 0], sizes = [8, 128], strides = [1, 1]} : vector<8x256xf32> to vector<8x128xf32>
    %19 = vector.extract_strided_slice %17 {offsets = [0, 128], sizes = [8, 128], strides = [1, 1]} : vector<8x256xf32> to vector<8x128xf32>
    %cst_12 = arith.constant 0.000000e+00 : f32
    %20 = vector.broadcast %cst_12 : f32 to vector<8x128xf32>
    %21 = arith.maximumf %19, %20 : vector<8x128xf32>
    %22 = math.absf %19 : vector<8x128xf32>
    %cst_13 = arith.constant 0.000000e+00 : f32
    %23 = vector.broadcast %cst_13 : f32 to vector<8x128xf32>
    %24 = arith.subf %23, %22 : vector<8x128xf32>
    %25 = math.exp %24 : vector<8x128xf32>
    %26 = math.log1p %25 : vector<8x128xf32>
    %27 = arith.addf %21, %26 : vector<8x128xf32>
    %cst_14 = arith.constant 9.99999997E-7 : f32
    %28 = vector.broadcast %cst_14 : f32 to vector<8x128xf32>
    %29 = arith.addf %27, %28 : vector<8x128xf32>
    %c0_15 = arith.constant 0 : index
    %c0_16 = arith.constant 0 : index
    %30 = vector.load %arg3[%c0_15, %c0_16] : memref<8x512xf32, #tpu.memory_space<vmem>>, vector<8x512xf32>
    %31 = arith.truncf %30 : vector<8x512xf32> to vector<8x512xbf16>
    %c0_17 = arith.constant 0 : index
    %c0_18 = arith.constant 0 : index
    %32 = vector.load %arg8[%c0_17, %c0_18] : memref<512x512xbf16, #tpu.memory_space<vmem>>, vector<512x512xbf16>
    %cst_19 = arith.constant dense<0.000000e+00> : vector<8x512xf32>
    %33 = tpu.matmul %31, %32, %cst_19 {dimension_numbers = #tpu.dot_dimension_numbers<[1], [0], [0], [1], [0, 0, 1, 1], [], []>} : vector<8x512xbf16>, vector<512x512xbf16>, vector<8x512xf32> -> vector<8x512xf32>
    %c0_20 = arith.constant 0 : index
    %c0_21 = arith.constant 0 : index
    %34 = vector.load %arg9[%c0_20, %c0_21] : memref<1x512xf32, #tpu.memory_space<vmem>>, vector<1x512xf32>
    %35 = vector.broadcast %34 : vector<1x512xf32> to vector<8x512xf32>
    %36 = arith.addf %33, %35 : vector<8x512xf32>
    %cst_22 = arith.constant 0.000000e+00 : f32
    %37 = vector.broadcast %cst_22 : f32 to vector<8x512xf32>
    %38 = arith.maximumf %36, %37 : vector<8x512xf32>
    %39 = arith.truncf %38 : vector<8x512xf32> to vector<8x512xbf16>
    %c0_23 = arith.constant 0 : index
    %c0_24 = arith.constant 0 : index
    %40 = vector.load %arg10[%c0_23, %c0_24] : memref<512x256xbf16, #tpu.memory_space<vmem>>, vector<512x256xbf16>
    %cst_25 = arith.constant dense<0.000000e+00> : vector<8x256xf32>
    %41 = tpu.matmul %39, %40, %cst_25 {dimension_numbers = #tpu.dot_dimension_numbers<[1], [0], [0], [1], [0, 0, 1, 1], [], []>} : vector<8x512xbf16>, vector<512x256xbf16>, vector<8x256xf32> -> vector<8x256xf32>
    %c0_26 = arith.constant 0 : index
    %c0_27 = arith.constant 0 : index
    %42 = vector.load %arg11[%c0_26, %c0_27] : memref<1x256xf32, #tpu.memory_space<vmem>>, vector<1x256xf32>
    %43 = vector.broadcast %42 : vector<1x256xf32> to vector<8x256xf32>
    %44 = arith.addf %41, %43 : vector<8x256xf32>
    %45 = vector.extract_strided_slice %44 {offsets = [0, 0], sizes = [8, 128], strides = [1, 1]} : vector<8x256xf32> to vector<8x128xf32>
    %46 = vector.extract_strided_slice %44 {offsets = [0, 128], sizes = [8, 128], strides = [1, 1]} : vector<8x256xf32> to vector<8x128xf32>
    %cst_28 = arith.constant 0.000000e+00 : f32
    %47 = vector.broadcast %cst_28 : f32 to vector<8x128xf32>
    %48 = arith.maximumf %46, %47 : vector<8x128xf32>
    %49 = math.absf %46 : vector<8x128xf32>
    %cst_29 = arith.constant 0.000000e+00 : f32
    %50 = vector.broadcast %cst_29 : f32 to vector<8x128xf32>
    %51 = arith.subf %50, %49 : vector<8x128xf32>
    %52 = math.exp %51 : vector<8x128xf32>
    %53 = math.log1p %52 : vector<8x128xf32>
    %54 = arith.addf %48, %53 : vector<8x128xf32>
    %cst_30 = arith.constant 9.99999997E-7 : f32
    %55 = vector.broadcast %cst_30 : f32 to vector<8x128xf32>
    %56 = arith.addf %54, %55 : vector<8x128xf32>
    %57 = arith.addf %29, %56 : vector<8x128xf32>
    %cst_31 = arith.constant 5.000000e-01 : f32
    %58 = vector.broadcast %cst_31 : f32 to vector<8x128xf32>
    %59 = arith.mulf %58, %57 : vector<8x128xf32>
    %60 = arith.subf %18, %45 : vector<8x128xf32>
    %cst_32 = arith.constant 5.000000e-01 : f32
    %61 = vector.broadcast %cst_32 : f32 to vector<8x128xf32>
    %62 = arith.mulf %61, %60 : vector<8x128xf32>
    %63 = arith.mulf %59, %59 : vector<8x128xf32>
    %64 = tpu.reciprocal %63 {approx = true} : vector<8x128xf32> -> vector<8x128xf32>
    %65 = arith.mulf %29, %56 : vector<8x128xf32>
    %66 = tpu.reciprocal %65 {approx = true} : vector<8x128xf32> -> vector<8x128xf32>
    %67 = arith.mulf %63, %66 : vector<8x128xf32>
    %68 = math.log %67 : vector<8x128xf32>
    %69 = arith.mulf %29, %29 : vector<8x128xf32>
    %70 = arith.mulf %56, %56 : vector<8x128xf32>
    %71 = arith.addf %69, %70 : vector<8x128xf32>
    %72 = arith.mulf %62, %62 : vector<8x128xf32>
    %cst_33 = arith.constant 2.000000e+00 : f32
    %73 = vector.broadcast %cst_33 : f32 to vector<8x128xf32>
    %74 = arith.mulf %73, %72 : vector<8x128xf32>
    %75 = arith.addf %71, %74 : vector<8x128xf32>
    %76 = arith.mulf %75, %64 : vector<8x128xf32>
    %cst_34 = arith.constant 5.000000e-01 : f32
    %77 = vector.broadcast %cst_34 : f32 to vector<8x128xf32>
    %78 = arith.mulf %77, %68 : vector<8x128xf32>
    %cst_35 = arith.constant 2.500000e-01 : f32
    %79 = vector.broadcast %cst_35 : f32 to vector<8x128xf32>
    %80 = arith.mulf %79, %76 : vector<8x128xf32>
    %81 = arith.addf %78, %80 : vector<8x128xf32>
    %cst_36 = arith.constant 5.000000e-01 : f32
    %82 = vector.broadcast %cst_36 : f32 to vector<8x128xf32>
    %83 = arith.subf %81, %82 : vector<8x128xf32>
    %84 = tpu.iota {dimensions = array<i32: 1>} : vector<8x128xi32>
    %c2_i32 = arith.constant 2 : i32
    %85 = vector.broadcast %c2_i32 : i32 to vector<8x128xi32>
    %86 = arith.cmpi slt, %84, %85 : vector<8x128xi32>
    %cst_37 = arith.constant 0.000000e+00 : f32
    %87 = vector.broadcast %cst_37 : f32 to vector<8x128xf32>
    %88 = arith.select %86, %83, %87 : vector<8x128xi1>, vector<8x128xf32>
    %c0_38 = arith.constant 0 : index
    %c0_39 = arith.constant 0 : index
    %89 = vector.load %arg12[%c0_38, %c0_39] : memref<8x128xf32, #tpu.memory_space<vmem>>, vector<1x128xf32>
    %cst_40 = arith.constant dense<0.000000e+00> : vector<128xf32>
    %90 = vector.multi_reduction <add>, %88, %cst_40 [0] : vector<8x128xf32> to vector<128xf32>
    %91 = vector.shape_cast %90 : vector<128xf32> to vector<1x128xf32>
    %92 = arith.addf %89, %91 : vector<1x128xf32>
    %c0_41 = arith.constant 0 : index
    %c0_42 = arith.constant 0 : index
    %93 = vector.load %arg12[%c0_41, %c0_42] : memref<8x128xf32, #tpu.memory_space<vmem>>, vector<1x128xf32>
    tpu.vector_store %arg12[%c0_41, %c0_42], %92 {strides = array<i32>} : memref<8x128xf32, #tpu.memory_space<vmem>>, vector<1x128xf32>,
    return
  }
  func.func @transform_0(%arg0: i32, %arg1: i32) -> (i32, i32) {
    %c1_i32 = arith.constant 1 : i32
    %0 = arith.muli %arg0, %c1_i32 : i32
    %1 = arith.addi %0, %arg1 : i32
    %c0_i32 = arith.constant 0 : i32
    %c0_i32_0 = arith.constant 0 : i32
    return %1, %c0_i32 : i32, i32
  }
  func.func @transform_1(%arg0: i32, %arg1: i32) -> (i32, i32) {
    %c1_i32 = arith.constant 1 : i32
    %0 = arith.muli %arg0, %c1_i32 : i32
    %1 = arith.addi %0, %arg1 : i32
    %c0_i32 = arith.constant 0 : i32
    %c0_i32_0 = arith.constant 0 : i32
    return %1, %c0_i32 : i32, i32
  }
  func.func @transform_2(%arg0: i32, %arg1: i32) -> (i32, i32) {
    %c0_i32 = arith.constant 0 : i32
    %c0_i32_0 = arith.constant 0 : i32
    %c0_i32_1 = arith.constant 0 : i32
    return %c0_i32, %c0_i32_0 : i32, i32
  }
  func.func @transform_3(%arg0: i32, %arg1: i32) -> (i32, i32) {
    %c0_i32 = arith.constant 0 : i32
    %c0_i32_0 = arith.constant 0 : i32
    %c0_i32_1 = arith.constant 0 : i32
    return %c0_i32, %c0_i32_0 : i32, i32
  }
  func.func @transform_4(%arg0: i32, %arg1: i32) -> (i32, i32) {
    %c0_i32 = arith.constant 0 : i32
    %c0_i32_0 = arith.constant 0 : i32
    %c0_i32_1 = arith.constant 0 : i32
    return %c0_i32, %c0_i32_0 : i32, i32
  }
  func.func @transform_5(%arg0: i32, %arg1: i32) -> (i32, i32) {
    %c0_i32 = arith.constant 0 : i32
    %c0_i32_0 = arith.constant 0 : i32
    %c0_i32_1 = arith.constant 0 : i32
    return %c0_i32, %c0_i32_0 : i32, i32
  }
  func.func @transform_6(%arg0: i32, %arg1: i32) -> (i32, i32) {
    %c0_i32 = arith.constant 0 : i32
    %c0_i32_0 = arith.constant 0 : i32
    %c0_i32_1 = arith.constant 0 : i32
    return %c0_i32, %c0_i32_0 : i32, i32
  }
  func.func @transform_7(%arg0: i32, %arg1: i32) -> (i32, i32) {
    %c0_i32 = arith.constant 0 : i32
    %c0_i32_0 = arith.constant 0 : i32
    %c0_i32_1 = arith.constant 0 : i32
    return %c0_i32, %c0_i32_0 : i32, i32
  }
  func.func @transform_8(%arg0: i32, %arg1: i32) -> (i32, i32) {
    %c0_i32 = arith.constant 0 : i32
    %c0_i32_0 = arith.constant 0 : i32
    %c0_i32_1 = arith.constant 0 : i32
    return %c0_i32, %c0_i32_0 : i32, i32
  }
  func.func @transform_9(%arg0: i32, %arg1: i32) -> (i32, i32) {
    %c0_i32 = arith.constant 0 : i32
    %c0_i32_0 = arith.constant 0 : i32
    %c0_i32_1 = arith.constant 0 : i32
    return %c0_i32, %c0_i32_0 : i32, i32
  }
  func.func @transform_10(%arg0: i32, %arg1: i32) -> (i32, i32) {
    %c0_i32 = arith.constant 0 : i32
    %c0_i32_0 = arith.constant 0 : i32
    return %c0_i32, %arg0 : i32, i32
  }
}

</mosaic_0001>

<llo_original>
// kernel: ambiguity_js_forward.1
$region0: #{ambiguity_js_forward.1}
  #allocation0 [shape = 'u32[]', space=smem, size = 0x4, offset = 0x4, fixed_abs, tag = 'smem constant byte address 0x4 - core index']
  #allocation1 [shape = 'u32[144,128]{1,0:T(1,128)}', space=vmem, size = 0x12000, scoped, tag = 'internal scratch']
  %s0 = inlined_call_operand.hbm [shape: f32[8,512], index: 0, kind: input, shape index: {}]
  %s1 = inlined_call_operand.hbm [shape: f32[8,512], index: 1, kind: input, shape index: {}]
  %s2 = inlined_call_operand.hbm [shape: bf16[512,512], index: 2, kind: input, shape index: {}]
  %s3 = inlined_call_operand.vmem [shape: f32[1,512], index: 3, kind: input, shape index: {}]
  %s4 = inlined_call_operand.hbm [shape: bf16[512,256], index: 4, kind: input, shape index: {}]
  %s5 = inlined_call_operand.hbm [shape: f32[1,256], index: 5, kind: input, shape index: {}]
  %s6 = inlined_call_operand.hbm [shape: bf16[512,512], index: 6, kind: input, shape index: {}]
  %s7 = inlined_call_operand.vmem [shape: f32[1,512], index: 7, kind: input, shape index: {}]
  %s8 = inlined_call_operand.hbm [shape: bf16[512,256], index: 8, kind: input, shape index: {}]
  %s9 = inlined_call_operand.vmem [shape: f32[1,256], index: 9, kind: input, shape index: {}]
  %s10 = inlined_call_operand.vmem [shape: f32[8,128], index: 10, kind: output, shape index: {}]
  %s11 = sld [smem:[#allocation0]]
  $region82: #{ambiguity_js_forward.1} parent=0
    _
  %s13 = ssub.s32 1, %s11
  %s14 = scalar_select 0, %s13, %s11
  $region1: #{ambiguity_js_forward.1} parent=0
    #allocation2 [shape = 'u8[16384]{0}', space=vmem, size = 0x4000, scoped, tag = 'input window, operand 0, single buffered']
    #allocation3 [shape = 's32[1]{0}', space=sflag, size = 0x4, scoped, tag = 'scoped memory for ambiguity_js_forward.1']
    #allocation4 [shape = 'u8[16384]{0}', space=vmem, size = 0x4000, scoped, tag = 'input window, operand 1, single buffered']
    #allocation5 [shape = 's32[1]{0}', space=sflag, size = 0x4, scoped, tag = 'scoped memory for ambiguity_js_forward.1']
    #allocation6 [shape = 'u8[524288]{0}', space=vmem, size = 0x80000, scoped, tag = 'input window, operand 2, single buffered']
    #allocation7 [shape = 'u8[262144]{0}', space=vmem, size = 0x40000, scoped, tag = 'input window, operand 4, single buffered']
    #allocation8 [shape = 's32[1]{0}', space=sflag, size = 0x4, scoped, tag = 'scoped memory for ambiguity_js_forward.1']
    #allocation9 [shape = 'u8[1024]{0}', space=vmem, size = 0x400, scoped, tag = 'input window, operand 5, single buffered']
    #allocation10 [shape = 'u8[524288]{0}', space=vmem, size = 0x80000, scoped, tag = 'input window, operand 6, single buffered']
    #allocation11 [shape = 's32[1]{0}', space=sflag, size = 0x4, scoped, tag = 'scoped memory for ambiguity_js_forward.1']
    #allocation12 [shape = 'u8[262144]{0}', space=vmem, size = 0x40000, scoped, tag = 'input window, operand 8, single buffered']
    %15 = vsyncpa [#allocation3], 0
    %16 = vsyncpa [#allocation5], 0
    %17 = vsyncpa [#allocation8], 0
    %18 = vsyncpa [#allocation11], 0
    // Predicated region
    $region2: #{ambiguity_js_forward.1} parent=1 // pred_check
      _
    $region3: #{ambiguity_js_forward.1} parent=1 // pred_check_branch
      %20 = sbr.rel (0) target = $region5
    $region4: #{ambiguity_js_forward.1} parent=1 // pred_region
      %s21 = sadd.s32 0, 0
      %s23 = ssub.s32 512, 512
      %24 = vsyncadd [#allocation3], %s23
      %s25 = smul.addr %s21, 4
      %s26 = smul.addr %s25, 128
      %s27 = scalar_lea.hbm %s0, %s26
      %s29 = sshll.u32 [#allocation2], 4
      %s30 = int_to_ptr.vmem [resolvable:$true] %s29
      %32 = dma.hbm_to_vmem [thread:$0]  %s27, 512, %s30, [#allocation3]
    $region5: #{ambiguity_js_forward.1} parent=1 // pred_fallthru
      _
    // Predicated region
    $region6: #{ambiguity_js_forward.1} parent=1 // pred_check
      _
    $region7: #{ambiguity_js_forward.1} parent=1 // pred_check_branch
      %34 = sbr.rel (0) target = $region9
    $region8: #{ambiguity_js_forward.1} parent=1 // pred_region
      %s35 = sadd.s32 0, 0
      %s37 = ssub.s32 512, 512
      %38 = vsyncadd [#allocation5], %s37
      %s39 = smul.addr %s35, 4
      %s40 = smul.addr %s39, 128
      %s41 = scalar_lea.hbm %s1, %s40
      %s43 = sshll.u32 [#allocation4], 4
      %s44 = int_to_ptr.vmem [resolvable:$true] %s43
      %46 = dma.hbm_to_vmem [thread:$0]  %s41, 512, %s44, [#allocation5]
    $region9: #{ambiguity_js_forward.1} parent=1 // pred_fallthru
      _
    // Predicated region
    $region10: #{ambiguity_js_forward.1} parent=1 // pred_check
      _
    $region11: #{ambiguity_js_forward.1} parent=1 // pred_check_branch
      %48 = sbr.rel (0) target = $region13
    $region12: #{ambiguity_js_forward.1} parent=1 // pred_region
      %s50 = ssub.s32 16384, 16384
      %51 = vsyncadd [#allocation5], %s50
      %s52 = sshll.u32 [#allocation6], 4
      %s53 = int_to_ptr.vmem [resolvable:$true] %s52
      %58 = dma.hbm_to_vmem [thread:$0]  %s2, 16384, %s53, [#allocation5], 256, 256, 16
    $region13: #{ambiguity_js_forward.1} parent=1 // pred_fallthru
      _
    // Predicated region
    $region14: #{ambiguity_js_forward.1} parent=1 // pred_check
      _
    $region15: #{ambiguity_js_forward.1} parent=1 // pred_check_branch
      %60 = sbr.rel (0) target = $region17
    $region16: #{ambiguity_js_forward.1} parent=1 // pred_region
      _
    $region17: #{ambiguity_js_forward.1} parent=1 // pred_fallthru
      _
    // Predicated region
    $region18: #{ambiguity_js_forward.1} parent=1 // pred_check
      _
    $region19: #{ambiguity_js_forward.1} parent=1 // pred_check_branch
      %62 = sbr.rel (0) target = $region21
    $region20: #{ambiguity_js_forward.1} parent=1 // pred_region
      %s64 = ssub.s32 8192, 8192
      %65 = vsyncadd [#allocation8], %s64
      %s66 = sshll.u32 [#allocation7], 4
      %s67 = int_to_ptr.vmem [resolvable:$true] %s66
      %72 = dma.hbm_to_vmem [thread:$0]  %s4, 8192, %s67, [#allocation8], 128, 128, 8
    $region21: #{ambiguity_js_forward.1} parent=1 // pred_fallthru
      _
    // Predicated region
    $region22: #{ambiguity_js_forward.1} parent=1 // pred_check
      _
    $region23: #{ambiguity_js_forward.1} parent=1 // pred_check_branch
      %74 = sbr.rel (0) target = $region25
    $region24: #{ambiguity_js_forward.1} parent=1 // pred_region
      %s76 = ssub.s32 32, 32
      %77 = vsyncadd [#allocation8], %s76
      %s79 = sshll.u32 [#allocation9], 4
      %s80 = int_to_ptr.vmem [resolvable:$true] %s79
      %82 = dma.hbm_to_vmem [thread:$0]  %s5, 32, %s80, [#allocation8]
    $region25: #{ambiguity_js_forward.1} parent=1 // pred_fallthru
      _
    // Predicated region
    $region26: #{ambiguity_js_forward.1} parent=1 // pred_check
      _
    $region27: #{ambiguity_js_forward.1} parent=1 // pred_check_branch
      %84 = sbr.rel (0) target = $region29
    $region28: #{ambiguity_js_forward.1} parent=1 // pred_region
      %s86 = ssub.s32 16384, 16384
      %87 = vsyncadd [#allocation11], %s86
      %s88 = sshll.u32 [#allocation10], 4
      %s89 = int_to_ptr.vmem [resolvable:$true] %s88
      %94 = dma.hbm_to_vmem [thread:$0]  %s6, 16384, %s89, [#allocation11], 256, 256, 16
    $region29: #{ambiguity_js_forward.1} parent=1 // pred_fallthru
      _
    // Predicated region
    $region30: #{ambiguity_js_forward.1} parent=1 // pred_check
      _
    $region31: #{ambiguity_js_forward.1} parent=1 // pred_check_branch
      %96 = sbr.rel (0) target = $region33
    $region32: #{ambiguity_js_forward.1} parent=1 // pred_region
      _
    $region33: #{ambiguity_js_forward.1} parent=1 // pred_fallthru
      _
    // Predicated region
    $region34: #{ambiguity_js_forward.1} parent=1 // pred_check
      _
    $region35: #{ambiguity_js_forward.1} parent=1 // pred_check_branch
      %98 = sbr.rel (0) target = $region37
    $region36: #{ambiguity_js_forward.1} parent=1 // pred_region
      %s100 = ssub.s32 8192, 8192
      %101 = vsyncadd [#allocation11], %s100
      %s102 = sshll.u32 [#allocation12], 4
      %s103 = int_to_ptr.vmem [resolvable:$true] %s102
      %108 = dma.hbm_to_vmem [thread:$0]  %s8, 8192, %s103, [#allocation11], 128, 128, 8
    $region37: #{ambiguity_js_forward.1} parent=1 // pred_fallthru
      _
    // Predicated region
    $region38: #{ambiguity_js_forward.1} parent=1 // pred_check
      _
    $region39: #{ambiguity_js_forward.1} parent=1 // pred_check_branch
      %110 = sbr.rel (0) target = $region41
    $region40: #{ambiguity_js_forward.1} parent=1 // pred_region
      _
    $region41: #{ambiguity_js_forward.1} parent=1 // pred_fallthru
      _
    // Predicated region
    $region42: #{ambiguity_js_forward.1} parent=1 // pred_check
      _
    $region43: #{ambiguity_js_forward.1} parent=1 // pred_check_branch
      %112 = sbr.rel (0) target = $region45
    $region44: #{ambiguity_js_forward.1} parent=1 // pred_region
      %113 = dma.done [#allocation3], 512
    $region45: #{ambiguity_js_forward.1} parent=1 // pred_fallthru
      _
    // Predicated region
    $region46: #{ambiguity_js_forward.1} parent=1 // pred_check
      _
    $region47: #{ambiguity_js_forward.1} parent=1 // pred_check_branch
      %115 = sbr.rel (0) target = $region49
    $region48: #{ambiguity_js_forward.1} parent=1 // pred_region
      %116 = dma.done [#allocation5], 512
    $region49: #{ambiguity_js_forward.1} parent=1 // pred_fallthru
      _
    // Predicated region
    $region50: #{ambiguity_js_forward.1} parent=1 // pred_check
      _
    $region51: #{ambiguity_js_forward.1} parent=1 // pred_check_branch
      %118 = sbr.rel (0) target = $region53
    $region52: #{ambiguity_js_forward.1} parent=1 // pred_region
      %119 = dma.done [#allocation5], 16384
    $region53: #{ambiguity_js_forward.1} parent=1 // pred_fallthru
      _
    // Predicated region
    $region54: #{ambiguity_js_forward.1} parent=1 // pred_check
      _
    $region55: #{ambiguity_js_forward.1} parent=1 // pred_check_branch
      %121 = sbr.rel (0) target = $region57
    $region56: #{ambiguity_js_forward.1} parent=1 // pred_region
      %122 = dma.done [#allocation8], 8192
    $region57: #{ambiguity_js_forward.1} parent=1 // pred_fallthru
      _
    // Predicated region
    $region58: #{ambiguity_js_forward.1} parent=1 // pred_check
      _
    $region59: #{ambiguity_js_forward.1} parent=1 // pred_check_branch
      %124 = sbr.rel (0) target = $region61
    $region60: #{ambiguity_js_forward.1} parent=1 // pred_region
      %125 = dma.done [#allocation8], 32
    $region61: #{ambiguity_js_forward.1} parent=1 // pred_fallthru
      _
    // Predicated region
    $region62: #{ambiguity_js_forward.1} parent=1 // pred_check
      _
    $region63: #{ambiguity_js_forward.1} parent=1 // pred_check_branch
      %127 = sbr.rel (0) target = $region65
    $region64: #{ambiguity_js_forward.1} parent=1 // pred_region
      %128 = dma.done [#allocation11], 16384
    $region65: #{ambiguity_js_forward.1} parent=1 // pred_fallthru
      _
    // Predicated region
    $region66: #{ambiguity_js_forward.1} parent=1 // pred_check
      _
    $region67: #{ambiguity_js_forward.1} parent=1 // pred_check_branch
      %130 = sbr.rel (0) target = $region69
    $region68: #{ambiguity_js_forward.1} parent=1 // pred_region
      %131 = dma.done [#allocation11], 8192
    $region69: #{ambiguity_js_forward.1} parent=1 // pred_fallthru
      _
    %s132 = sadd.s32 0, 0
    %s133 = sadd.s32 0, 0
    %p134 = scmp.eq.s32.totalorder 0, 0
    // Predicated region
    $region70: #{ambiguity_js_forward.1} parent=1 // pred_check
      %p135 = pneg %p134
    $region71: #{ambiguity_js_forward.1} parent=1 // pred_check_branch
      %137 = sbr.rel (%p135) target = $region73
    $region72: #{ambiguity_js_forward.1} parent=1 // pred_region
      %138 = vst [vmem:[%s10] sm:$0xff] 0.0
    $region73: #{ambiguity_js_forward.1} parent=1 // pred_fallthru
      _
    %v139 = vld [vmem:[#allocation2] sm:$0xff]
    %v140 = vld [vmem:[#allocation2 + $0x8] sm:$0xff]
    %v141 = vld [vmem:[#allocation2 + $0x10] sm:$0xff]
    %v142 = vld [vmem:[#allocation2 + $0x18] sm:$0xff]
    %v143 = vpack.c.bf16 %v139, %v139
    %v144 = vpack.c.bf16 %v140, %v140
    %v145 = vpack.c.bf16 %v141, %v141
    %v146 = vpack.c.bf16 %v142, %v142
    %v147 = vld [vmem:[#allocation6] sm:$0xff]
    %v148 = vld [vmem:[#allocation6 + $0x8] sm:$0xff]
    %v149 = vld [vmem:[#allocation6 + $0x10] sm:$0xff]
    %v150 = vld [vmem:[#allocation6 + $0x18] sm:$0xff]
    %v151 = vld [vmem:[#allocation6 + $0x20] sm:$0xff]
    %v152 = vld [vmem:[#allocation6 + $0x28] sm:$0xff]
    %v153 = vld [vmem:[#allocation6 + $0x30] sm:$0xff]
    %v154 = vld [vmem:[#allocation6 + $0x38] sm:$0xff]
    %v155 = vld [vmem:[#allocation6 + $0x40] sm:$0xff]
    %v156 = vld [vmem:[#allocation6 + $0x48] sm:$0xff]
    %v157 = vld [vmem:[#allocation6 + $0x50] sm:$0xff]
    %v158 = vld [vmem:[#allocation6 + $0x58] sm:$0xff]
    %v159 = vld [vmem:[#allocation6 + $0x60] sm:$0xff]
    %v160 = vld [vmem:[#allocation6 + $0x68] sm:$0xff]
    %v161 = vld [vmem:[#allocation6 + $0x70] sm:$0xff]
    %v162 = vld [vmem:[#allocation6 + $0x78] sm:$0xff]
    %v163 = vld [vmem:[#allocation6 + $0x80] sm:$0xff]
    %v164 = vld [vmem:[#allocation6 + $0x88] sm:$0xff]
    %v165 = vld [vmem:[#allocation6 + $0x90] sm:$0xff]
    %v166 = vld [vmem:[#allocation6 + $0x98] sm:$0xff]
    %v167 = vld [vmem:[#allocation6 + $0xa0] sm:$0xff]
    %v168 = vld [vmem:[#allocation6 + $0xa8] sm:$0xff]
    %v169 = vld [vmem:[#allocation6 + $0xb0] sm:$0xff]
    %v170 = vld [vmem:[#allocation6 + $0xb8] sm:$0xff]
    %v171 = vld [vmem:[#allocation6 + $0xc0] sm:$0xff]
    %v172 = vld [vmem:[#allocation6 + $0xc8] sm:$0xff]
    %v173 = vld [vmem:[#allocation6 + $0xd0] sm:$0xff]
    %v174 = vld [vmem:[#allocation6 + $0xd8] sm:$0xff]
    %v175 = vld [vmem:[#allocation6 + $0xe0] sm:$0xff]
    %v176 = vld [vmem:[#allocation6 + $0xe8] sm:$0xff]
    %v177 = vld [vmem:[#allocation6 + $0xf0] sm:$0xff]
    %v178 = vld [vmem:[#allocation6 + $0xf8] sm:$0xff]
    %v179 = vld [vmem:[#allocation6 + $0x100] sm:$0xff]
    %v180 = vld [vmem:[#allocation6 + $0x108] sm:$0xff]
    %v181 = vld [vmem:[#allocation6 + $0x110] sm:$0xff]
    %v182 = vld [vmem:[#allocation6 + $0x118] sm:$0xff]
    %v183 = vld [vmem:[#allocation6 + $0x120] sm:$0xff]
    %v184 = vld [vmem:[#allocation6 + $0x128] sm:$0xff]
    %v185 = vld [vmem:[#allocation6 + $0x130] sm:$0xff]
    %v186 = vld [vmem:[#allocation6 + $0x138] sm:$0xff]
    %v187 = vld [vmem:[#allocation6 + $0x140] sm:$0xff]
    %v188 = vld [vmem:[#allocation6 + $0x148] sm:$0xff]
    %v189 = vld [vmem:[#allocation6 + $0x150] sm:$0xff]
    %v190 = vld [vmem:[#allocation6 + $0x158] sm:$0xff]
    %v191 = vld [vmem:[#allocation6 + $0x160] sm:$0xff]
    %v192 = vld [vmem:[#allocation6 + $0x168] sm:$0xff]
    %v193 = vld [vmem:[#allocation6 + $0x170] sm:$0xff]
    %v194 = vld [vmem:[#allocation6 + $0x178] sm:$0xff]
    %v195 = vld [vmem:[#allocation6 + $0x180] sm:$0xff]
    %v196 = vld [vmem:[#allocation6 + $0x188] sm:$0xff]
    %v197 = vld [vmem:[#allocation6 + $0x190] sm:$0xff]
    %v198 = vld [vmem:[#allocation6 + $0x198] sm:$0xff]
    %v199 = vld [vmem:[#allocation6 + $0x1a0] sm:$0xff]
    %v200 = vld [vmem:[#allocation6 + $0x1a8] sm:$0xff]
    %v201 = vld [vmem:[#allocation6 + $0x1b0] sm:$0xff]
    %v202 = vld [vmem:[#allocation6 + $0x1b8] sm:$0xff]
    %v203 = vld [vmem:[#allocation6 + $0x1c0] sm:$0xff]
    %v204 = vld [vmem:[#allocation6 + $0x1c8] sm:$0xff]
    %v205 = vld [vmem:[#allocation6 + $0x1d0] sm:$0xff]
    %v206 = vld [vmem:[#allocation6 + $0x1d8] sm:$0xff]
    %v207 = vld [vmem:[#allocation6 + $0x1e0] sm:$0xff]
    %v208 = vld [vmem:[#allocation6 + $0x1e8] sm:$0xff]
    %v209 = vld [vmem:[#allocation6 + $0x1f0] sm:$0xff]
    %v210 = vld [vmem:[#allocation6 + $0x1f8] sm:$0xff]
    %v211 = vld [vmem:[#allocation6 + $0x200] sm:$0xff]
    %v212 = vld [vmem:[#allocation6 + $0x208] sm:$0xff]
    %v213 = vld [vmem:[#allocation6 + $0x210] sm:$0xff]
    %v214 = vld [vmem:[#allocation6 + $0x218] sm:$0xff]
    %v215 = vld [vmem:[#allocation6 + $0x220] sm:$0xff]
    %v216 = vld [vmem:[#allocation6 + $0x228] sm:$0xff]
    %v217 = vld [vmem:[#allocation6 + $0x230] sm:$0xff]
    %v218 = vld [vmem:[#allocation6 + $0x238] sm:$0xff]
    %v219 = vld [vmem:[#allocation6 + $0x240] sm:$0xff]
    %v220 = vld [vmem:[#allocation6 + $0x248] sm:$0xff]
    %v221 = vld [vmem:[#allocation6 + $0x250] sm:$0xff]
    %v222 = vld [vmem:[#allocation6 + $0x258] sm:$0xff]
    %v223 = vld [vmem:[#allocation6 + $0x260] sm:$0xff]
    %v224 = vld [vmem:[#allocation6 + $0x268] sm:$0xff]
    %v225 = vld [vmem:[#allocation6 + $0x270] sm:$0xff]
    %v226 = vld [vmem:[#allocation6 + $0x278] sm:$0xff]
    %v227 = vld [vmem:[#allocation6 + $0x280] sm:$0xff]
    %v228 = vld [vmem:[#allocation6 + $0x288] sm:$0xff]
    %v229 = vld [vmem:[#allocation6 + $0x290] sm:$0xff]
    %v230 = vld [vmem:[#allocation6 + $0x298] sm:$0xff]
    %v231 = vld [vmem:[#allocation6 + $0x2a0] sm:$0xff]
    %v232 = vld [vmem:[#allocation6 + $0x2a8] sm:$0xff]
    %v233 = vld [vmem:[#allocation6 + $0x2b0] sm:$0xff]
    %v234 = vld [vmem:[#allocation6 + $0x2b8] sm:$0xff]
    %v235 = vld [vmem:[#allocation6 + $0x2c0] sm:$0xff]
    %v236 = vld [vmem:[#allocation6 + $0x2c8] sm:$0xff]
    %v237 = vld [vmem:[#allocation6 + $0x2d0] sm:$0xff]
    %v238 = vld [vmem:[#allocation6 + $0x2d8] sm:$0xff]
    %v239 = vld [vmem:[#allocation6 + $0x2e0] sm:$0xff]
    %v240 = vld [vmem:[#allocation6 + $0x2e8] sm:$0xff]
    %v241 = vld [vmem:[#allocation6 + $0x2f0] sm:$0xff]
    %v242 = vld [vmem:[#allocation6 + $0x2f8] sm:$0xff]
    %v243 = vld [vmem:[#allocation6 + $0x300] sm:$0xff]
    %v244 = vld [vmem:[#allocation6 + $0x308] sm:$0xff]
    %v245 = vld [vmem:[#allocation6 + $0x310] sm:$0xff]
    %v246 = vld [vmem:[#allocation6 + $0x318] sm:$0xff]
    %v247 = vld [vmem:[#allocation6 + $0x320] sm:$0xff]
    %v248 = vld [vmem:[#allocation6 + $0x328] sm:$0xff]
    %v249 = vld [vmem:[#allocation6 + $0x330] sm:$0xff]
    %v250 = vld [vmem:[#allocation6 + $0x338] sm:$0xff]
    %v251 = vld [vmem:[#allocation6 + $0x340] sm:$0xff]
    %v252 = vld [vmem:[#allocation6 + $0x348] sm:$0xff]
    %v253 = vld [vmem:[#allocation6 + $0x350] sm:$0xff]
    %v254 = vld [vmem:[#allocation6 + $0x358] sm:$0xff]
    %v255 = vld [vmem:[#allocation6 + $0x360] sm:$0xff]
    %v256 = vld [vmem:[#allocation6 + $0x368] sm:$0xff]
    %v257 = vld [vmem:[#allocation6 + $0x370] sm:$0xff]
    %v258 = vld [vmem:[#allocation6 + $0x378] sm:$0xff]
    %v259 = vld [vmem:[#allocation6 + $0x380] sm:$0xff]
    %v260 = vld [vmem:[#allocation6 + $0x388] sm:$0xff]
    %v261 = vld [vmem:[#allocation6 + $0x390] sm:$0xff]
    %v262 = vld [vmem:[#allocation6 + $0x398] sm:$0xff]
    %v263 = vld [vmem:[#allocation6 + $0x3a0] sm:$0xff]
    %v264 = vld [vmem:[#allocation6 + $0x3a8] sm:$0xff]
    %v265 = vld [vmem:[#allocation6 + $0x3b0] sm:$0xff]
    %v266 = vld [vmem:[#allocation6 + $0x3b8] sm:$0xff]
    %v267 = vld [vmem:[#allocation6 + $0x3c0] sm:$0xff]
    %v268 = vld [vmem:[#allocation6 + $0x3c8] sm:$0xff]
    %v269 = vld [vmem:[#allocation6 + $0x3d0] sm:$0xff]
    %v270 = vld [vmem:[#allocation6 + $0x3d8] sm:$0xff]
    %v271 = vld [vmem:[#allocation6 + $0x3e0] sm:$0xff]
    %v272 = vld [vmem:[#allocation6 + $0x3e8] sm:$0xff]
    %v273 = vld [vmem:[#allocation6 + $0x3f0] sm:$0xff]
    %v274 = vld [vmem:[#allocation6 + $0x3f8] sm:$0xff]
    %v275 = vld [vmem:[%s3] sm:$0xf]
    %v277 = vlaneseq
    %v278 = vshrl.u32 %v277, 7
    %v279 = vsub.s32 0, %v278
    %v280 = vrot.slane %v275, %v279
    %v281 = vlaneseq
    %v282 = vshrl.u32 %v281, 7
    %v283 = vsub.s32 1, %v282
    %v284 = vrot.slane %v275, %v283
    %v285 = vlaneseq
    %v286 = vshrl.u32 %v285, 7
    %v287 = vsub.s32 2, %v286
    %v288 = vrot.slane %v275, %v287
    %v289 = vlaneseq
    %v290 = vshrl.u32 %v289, 7
    %v291 = vsub.s32 3, %v290
    %v292 = vrot.slane %v275, %v291
    %v425 = vunpack.c.l.b16 %v147
    %v426 = vunpack.c.h.b16 %v147
    %v427 = vunpack.c.l.b16 %v148
    %v428 = vunpack.c.h.b16 %v148
    %v429 = vunpack.c.l.b16 %v149
    %v430 = vunpack.c.h.b16 %v149
    %v431 = vunpack.c.l.b16 %v150
    %v432 = vunpack.c.h.b16 %v150
    %v433 = vunpack.c.l.b16 %v151
    %v434 = vunpack.c.h.b16 %v151
    %v435 = vunpack.c.l.b16 %v152
    %v436 = vunpack.c.h.b16 %v152
    %v437 = vunpack.c.l.b16 %v153
    %v438 = vunpack.c.h.b16 %v153
    %v439 = vunpack.c.l.b16 %v154
    %v440 = vunpack.c.h.b16 %v154
    %v441 = vunpack.c.l.b16 %v155
    %v442 = vunpack.c.h.b16 %v155
    %v443 = vunpack.c.l.b16 %v156
    %v444 = vunpack.c.h.b16 %v156
    %v445 = vunpack.c.l.b16 %v157
    %v446 = vunpack.c.h.b16 %v157
    %v447 = vunpack.c.l.b16 %v158
    %v448 = vunpack.c.h.b16 %v158
    %v449 = vunpack.c.l.b16 %v159
    %v450 = vunpack.c.h.b16 %v159
    %v451 = vunpack.c.l.b16 %v160
    %v452 = vunpack.c.h.b16 %v160
    %v453 = vunpack.c.l.b16 %v161
    %v454 = vunpack.c.h.b16 %v161
    %v455 = vunpack.c.l.b16 %v162
    %v456 = vunpack.c.h.b16 %v162
    %v457 = vunpack.c.l.b16 %v163
    %v458 = vunpack.c.h.b16 %v163
    %v459 = vunpack.c.l.b16 %v164
    %v460 = vunpack.c.h.b16 %v164
    %v461 = vunpack.c.l.b16 %v165
    %v462 = vunpack.c.h.b16 %v165
    %v463 = vunpack.c.l.b16 %v166
    %v464 = vunpack.c.h.b16 %v166
    %v465 = vunpack.c.l.b16 %v167
    %v466 = vunpack.c.h.b16 %v167
    %v467 = vunpack.c.l.b16 %v168
    %v468 = vunpack.c.h.b16 %v168
    %v469 = vunpack.c.l.b16 %v169
    %v470 = vunpack.c.h.b16 %v169
    %v471 = vunpack.c.l.b16 %v170
    %v472 = vunpack.c.h.b16 %v170
    %v473 = vunpack.c.l.b16 %v171
    %v474 = vunpack.c.h.b16 %v171
    %v475 = vunpack.c.l.b16 %v172
    %v476 = vunpack.c.h.b16 %v172
    %v477 = vunpack.c.l.b16 %v173
    %v478 = vunpack.c.h.b16 %v173
    %v479 = vunpack.c.l.b16 %v174
    %v480 = vunpack.c.h.b16 %v174
    %v481 = vunpack.c.l.b16 %v175
    %v482 = vunpack.c.h.b16 %v175
    %v483 = vunpack.c.l.b16 %v176
    %v484 = vunpack.c.h.b16 %v176
    %v485 = vunpack.c.l.b16 %v177
    %v486 = vunpack.c.h.b16 %v177
    %v487 = vunpack.c.l.b16 %v178
    %v488 = vunpack.c.h.b16 %v178
    %v489 = vunpack.c.l.b16 %v179
    %v490 = vunpack.c.h.b16 %v179
    %v491 = vunpack.c.l.b16 %v180
    %v492 = vunpack.c.h.b16 %v180
    %v493 = vunpack.c.l.b16 %v181
    %v494 = vunpack.c.h.b16 %v181
    %v495 = vunpack.c.l.b16 %v182
    %v496 = vunpack.c.h.b16 %v182
    %v497 = vunpack.c.l.b16 %v183
    %v498 = vunpack.c.h.b16 %v183
    %v499 = vunpack.c.l.b16 %v184
    %v500 = vunpack.c.h.b16 %v184
    %v501 = vunpack.c.l.b16 %v185
    %v502 = vunpack.c.h.b16 %v185
    %v503 = vunpack.c.l.b16 %v186
    %v504 = vunpack.c.h.b16 %v186
    %v505 = vunpack.c.l.b16 %v187
    %v506 = vunpack.c.h.b16 %v187
    %v507 = vunpack.c.l.b16 %v188
    %v508 = vunpack.c.h.b16 %v188
    %v509 = vunpack.c.l.b16 %v189
    %v510 = vunpack.c.h.b16 %v189
    %v511 = vunpack.c.l.b16 %v190
    %v512 = vunpack.c.h.b16 %v190
    %v513 = vunpack.c.l.b16 %v191
    %v514 = vunpack.c.h.b16 %v191
    %v515 = vunpack.c.l.b16 %v192
    %v516 = vunpack.c.h.b16 %v192
    %v517 = vunpack.c.l.b16 %v193
    %v518 = vunpack.c.h.b16 %v193
    %v519 = vunpack.c.l.b16 %v194
    %v520 = vunpack.c.h.b16 %v194
    %v521 = vunpack.c.l.b16 %v195
    %v522 = vunpack.c.h.b16 %v195
    %v523 = vunpack.c.l.b16 %v196
    %v524 = vunpack.c.h.b16 %v196
    %v525 = vunpack.c.l.b16 %v197
    %v526 = vunpack.c.h.b16 %v197
    %v527 = vunpack.c.l.b16 %v198
    %v528 = vunpack.c.h.b16 %v198
    %v529 = vunpack.c.l.b16 %v199
    %v530 = vunpack.c.h.b16 %v199
    %v531 = vunpack.c.l.b16 %v200
    %v532 = vunpack.c.h.b16 %v200
    %v533 = vunpack.c.l.b16 %v201
    %v534 = vunpack.c.h.b16 %v201
    %v535 = vunpack.c.l.b16 %v202
    %v536 = vunpack.c.h.b16 %v202
    %v537 = vunpack.c.l.b16 %v203
    %v538 = vunpack.c.h.b16 %v203
    %v539 = vunpack.c.l.b16 %v204
    %v540 = vunpack.c.h.b16 %v204
    %v541 = vunpack.c.l.b16 %v205
    %v542 = vunpack.c.h.b16 %v205
    %v543 = vunpack.c.l.b16 %v206
    %v544 = vunpack.c.h.b16 %v206
    %v545 = vunpack.c.l.b16 %v207
    %v546 = vunpack.c.h.b16 %v207
    %v547 = vunpack.c.l.b16 %v208
    %v548 = vunpack.c.h.b16 %v208
    %v549 = vunpack.c.l.b16 %v209
    %v550 = vunpack.c.h.b16 %v209
    %v551 = vunpack.c.l.b16 %v210
    %v552 = vunpack.c.h.b16 %v210
    %v553 = vunpack.c.l.b16 %v211
    %v554 = vunpack.c.h.b16 %v211
    %v555 = vunpack.c.l.b16 %v212
    %v556 = vunpack.c.h.b16 %v212
    %v557 = vunpack.c.l.b16 %v213
    %v558 = vunpack.c.h.b16 %v213
    %v559 = vunpack.c.l.b16 %v214
    %v560 = vunpack.c.h.b16 %v214
    %v561 = vunpack.c.l.b16 %v215
    %v562 = vunpack.c.h.b16 %v215
    %v563 = vunpack.c.l.b16 %v216
    %v564 = vunpack.c.h.b16 %v216
    %v565 = vunpack.c.l.b16 %v217
    %v566 = vunpack.c.h.b16 %v217
    %v567 = vunpack.c.l.b16 %v218
    %v568 = vunpack.c.h.b16 %v218
    %v569 = vunpack.c.l.b16 %v219
    %v570 = vunpack.c.h.b16 %v219
    %v571 = vunpack.c.l.b16 %v220
    %v572 = vunpack.c.h.b16 %v220
    %v573 = vunpack.c.l.b16 %v221
    %v574 = vunpack.c.h.b16 %v221
    %v575 = vunpack.c.l.b16 %v222
    %v576 = vunpack.c.h.b16 %v222
    %v577 = vunpack.c.l.b16 %v223
    %v578 = vunpack.c.h.b16 %v223
    %v579 = vunpack.c.l.b16 %v224
    %v580 = vunpack.c.h.b16 %v224
    %v581 = vunpack.c.l.b16 %v225
    %v582 = vunpack.c.h.b16 %v225
    %v583 = vunpack.c.l.b16 %v226
    %v584 = vunpack.c.h.b16 %v226
    %v585 = vunpack.c.l.b16 %v227
    %v586 = vunpack.c.h.b16 %v227
    %v587 = vunpack.c.l.b16 %v228
    %v588 = vunpack.c.h.b16 %v228
    %v589 = vunpack.c.l.b16 %v229
    %v590 = vunpack.c.h.b16 %v229
    %v591 = vunpack.c.l.b16 %v230
    %v592 = vunpack.c.h.b16 %v230
    %v593 = vunpack.c.l.b16 %v231
    %v594 = vunpack.c.h.b16 %v231
    %v595 = vunpack.c.l.b16 %v232
    %v596 = vunpack.c.h.b16 %v232
    %v597 = vunpack.c.l.b16 %v233
    %v598 = vunpack.c.h.b16 %v233
    %v599 = vunpack.c.l.b16 %v234
    %v600 = vunpack.c.h.b16 %v234
    %v601 = vunpack.c.l.b16 %v235
    %v602 = vunpack.c.h.b16 %v235
    %v603 = vunpack.c.l.b16 %v236
    %v604 = vunpack.c.h.b16 %v236
    %v605 = vunpack.c.l.b16 %v237
    %v606 = vunpack.c.h.b16 %v237
    %v607 = vunpack.c.l.b16 %v238
    %v608 = vunpack.c.h.b16 %v238
    %v609 = vunpack.c.l.b16 %v239
    %v610 = vunpack.c.h.b16 %v239
    %v611 = vunpack.c.l.b16 %v240
    %v612 = vunpack.c.h.b16 %v240
    %v613 = vunpack.c.l.b16 %v241
    %v614 = vunpack.c.h.b16 %v241
    %v615 = vunpack.c.l.b16 %v242
    %v616 = vunpack.c.h.b16 %v242
    %v617 = vunpack.c.l.b16 %v243
    %v618 = vunpack.c.h.b16 %v243
    %v619 = vunpack.c.l.b16 %v244
    %v620 = vunpack.c.h.b16 %v244
    %v621 = vunpack.c.l.b16 %v245
    %v622 = vunpack.c.h.b16 %v245
    %v623 = vunpack.c.l.b16 %v246
    %v624 = vunpack.c.h.b16 %v246
    %v625 = vunpack.c.l.b16 %v247
    %v626 = vunpack.c.h.b16 %v247
    %v627 = vunpack.c.l.b16 %v248
    %v628 = vunpack.c.h.b16 %v248
    %v629 = vunpack.c.l.b16 %v249
    %v630 = vunpack.c.h.b16 %v249
    %v631 = vunpack.c.l.b16 %v250
    %v632 = vunpack.c.h.b16 %v250
    %v633 = vunpack.c.l.b16 %v251
    %v634 = vunpack.c.h.b16 %v251
    %v635 = vunpack.c.l.b16 %v252
    %v636 = vunpack.c.h.b16 %v252
    %v637 = vunpack.c.l.b16 %v253
    %v638 = vunpack.c.h.b16 %v253
    %v639 = vunpack.c.l.b16 %v254
    %v640 = vunpack.c.h.b16 %v254
    %v641 = vunpack.c.l.b16 %v255
    %v642 = vunpack.c.h.b16 %v255
    %v643 = vunpack.c.l.b16 %v256
    %v644 = vunpack.c.h.b16 %v256
    %v645 = vunpack.c.l.b16 %v257
    %v646 = vunpack.c.h.b16 %v257
    %v647 = vunpack.c.l.b16 %v258
    %v648 = vunpack.c.h.b16 %v258
    %v649 = vunpack.c.l.b16 %v259
    %v650 = vunpack.c.h.b16 %v259
    %v651 = vunpack.c.l.b16 %v260
    %v652 = vunpack.c.h.b16 %v260
    %v653 = vunpack.c.l.b16 %v261
    %v654 = vunpack.c.h.b16 %v261
    %v655 = vunpack.c.l.b16 %v262
    %v656 = vunpack.c.h.b16 %v262
    %v657 = vunpack.c.l.b16 %v263
    %v658 = vunpack.c.h.b16 %v263
    %v659 = vunpack.c.l.b16 %v264
    %v660 = vunpack.c.h.b16 %v264
    %v661 = vunpack.c.l.b16 %v265
    %v662 = vunpack.c.h.b16 %v265
    %v663 = vunpack.c.l.b16 %v266
    %v664 = vunpack.c.h.b16 %v266
    %v665 = vunpack.c.l.b16 %v267
    %v666 = vunpack.c.h.b16 %v267
    %v667 = vunpack.c.l.b16 %v268
    %v668 = vunpack.c.h.b16 %v268
    %v669 = vunpack.c.l.b16 %v269
    %v670 = vunpack.c.h.b16 %v269
    %v671 = vunpack.c.l.b16 %v270
    %v672 = vunpack.c.h.b16 %v270
    %v673 = vunpack.c.l.b16 %v271
    %v674 = vunpack.c.h.b16 %v271
    %v675 = vunpack.c.l.b16 %v272
    %v676 = vunpack.c.h.b16 %v272
    %v677 = vunpack.c.l.b16 %v273
    %v678 = vunpack.c.h.b16 %v273
    %v679 = vunpack.c.l.b16 %v274
    %v680 = vunpack.c.h.b16 %v274
    %v681 = vpack.c.b16 %v429, %v425
    %v682 = vpack.c.b16 %v430, %v426
    %v683 = vpack.c.b16 %v431, %v427
    %v684 = vpack.c.b16 %v432, %v428
    %v685 = vpack.c.b16 %v437, %v433
    %v686 = vpack.c.b16 %v438, %v434
    %v687 = vpack.c.b16 %v439, %v435
    %v688 = vpack.c.b16 %v440, %v436
    %v689 = vpack.c.b16 %v445, %v441
    %v690 = vpack.c.b16 %v446, %v442
    %v691 = vpack.c.b16 %v447, %v443
    %v692 = vpack.c.b16 %v448, %v444
    %v693 = vpack.c.b16 %v453, %v449
    %v694 = vpack.c.b16 %v454, %v450
    %v695 = vpack.c.b16 %v455, %v451
    %v696 = vpack.c.b16 %v456, %v452
    %v697 = vpack.c.b16 %v461, %v457
    %v698 = vpack.c.b16 %v462, %v458
    %v699 = vpack.c.b16 %v463, %v459
    %v700 = vpack.c.b16 %v464, %v460
    %v701 = vpack.c.b16 %v469, %v465
    %v702 = vpack.c.b16 %v470, %v466
    %v703 = vpack.c.b16 %v471, %v467
    %v704 = vpack.c.b16 %v472, %v468
    %v705 = vpack.c.b16 %v477, %v473
    %v706 = vpack.c.b16 %v478, %v474
    %v707 = vpack.c.b16 %v479, %v475
    %v708 = vpack.c.b16 %v480, %v476
    %v709 = vpack.c.b16 %v485, %v481
    %v710 = vpack.c.b16 %v486, %v482
    %v711 = vpack.c.b16 %v487, %v483
    %v712 = vpack.c.b16 %v488, %v484
    %v713 = vpack.c.b16 %v493, %v489
    %v714 = vpack.c.b16 %v494, %v490
    %v715 = vpack.c.b16 %v495, %v491
    %v716 = vpack.c.b16 %v496, %v492
    %v717 = vpack.c.b16 %v501, %v497
    %v718 = vpack.c.b16 %v502, %v498
    %v719 = vpack.c.b16 %v503, %v499
    %v720 = vpack.c.b16 %v504, %v500
    %v721 = vpack.c.b16 %v509, %v505
    %v722 = vpack.c.b16 %v510, %v506
    %v723 = vpack.c.b16 %v511, %v507
    %v724 = vpack.c.b16 %v512, %v508
    %v725 = vpack.c.b16 %v517, %v513
    %v726 = vpack.c.b16 %v518, %v514
    %v727 = vpack.c.b16 %v519, %v515
    %v728 = vpack.c.b16 %v520, %v516
    %v729 = vpack.c.b16 %v525, %v521
    %v730 = vpack.c.b16 %v526, %v522
    %v731 = vpack.c.b16 %v527, %v523
    %v732 = vpack.c.b16 %v528, %v524
    %v733 = vpack.c.b16 %v533, %v529
    %v734 = vpack.c.b16 %v534, %v530
    %v735 = vpack.c.b16 %v535, %v531
    %v736 = vpack.c.b16 %v536, %v532
    %v737 = vpack.c.b16 %v541, %v537
    %v738 = vpack.c.b16 %v542, %v538
    %v739 = vpack.c.b16 %v543, %v539
    %v740 = vpack.c.b16 %v544, %v540
    %v741 = vpack.c.b16 %v549, %v545
    %v742 = vpack.c.b16 %v550, %v546
    %v743 = vpack.c.b16 %v551, %v547
    %v744 = vpack.c.b16 %v552, %v548
    %v745 = vpack.c.b16 %v557, %v553
    %v746 = vpack.c.b16 %v558, %v554
    %v747 = vpack.c.b16 %v559, %v555
    %v748 = vpack.c.b16 %v560, %v556
    %v749 = vpack.c.b16 %v565, %v561
    %v750 = vpack.c.b16 %v566, %v562
    %v751 = vpack.c.b16 %v567, %v563
    %v752 = vpack.c.b16 %v568, %v564
    %v753 = vpack.c.b16 %v573, %v569
    %v754 = vpack.c.b16 %v574, %v570
    %v755 = vpack.c.b16 %v575, %v571
    %v756 = vpack.c.b16 %v576, %v572
    %v757 = vpack.c.b16 %v581, %v577
    %v758 = vpack.c.b16 %v582, %v578
    %v759 = vpack.c.b16 %v583, %v579
    %v760 = vpack.c.b16 %v584, %v580
    %v761 = vpack.c.b16 %v589, %v585
    %v762 = vpack.c.b16 %v590, %v586
    %v763 = vpack.c.b16 %v591, %v587
    %v764 = vpack.c.b16 %v592, %v588
    %v765 = vpack.c.b16 %v597, %v593
    %v766 = vpack.c.b16 %v598, %v594
    %v767 = vpack.c.b16 %v599, %v595
    %v768 = vpack.c.b16 %v600, %v596
    %v769 = vpack.c.b16 %v605, %v601
    %v770 = vpack.c.b16 %v606, %v602
    %v771 = vpack.c.b16 %v607, %v603
    %v772 = vpack.c.b16 %v608, %v604
    %v773 = vpack.c.b16 %v613, %v609
    %v774 = vpack.c.b16 %v614, %v610
    %v775 = vpack.c.b16 %v615, %v611
    %v776 = vpack.c.b16 %v616, %v612
    %v777 = vpack.c.b16 %v621, %v617
    %v778 = vpack.c.b16 %v622, %v618
    %v779 = vpack.c.b16 %v623, %v619
    %v780 = vpack.c.b16 %v624, %v620
    %v781 = vpack.c.b16 %v629, %v625
    %v782 = vpack.c.b16 %v630, %v626
    %v783 = vpack.c.b16 %v631, %v627
    %v784 = vpack.c.b16 %v632, %v628
    %v785 = vpack.c.b16 %v637, %v633
    %v786 = vpack.c.b16 %v638, %v634
    %v787 = vpack.c.b16 %v639, %v635
    %v788 = vpack.c.b16 %v640, %v636
    %v789 = vpack.c.b16 %v645, %v641
    %v790 = vpack.c.b16 %v646, %v642
    %v791 = vpack.c.b16 %v647, %v643
    %v792 = vpack.c.b16 %v648, %v644
    %v793 = vpack.c.b16 %v653, %v649
    %v794 = vpack.c.b16 %v654, %v650
    %v795 = vpack.c.b16 %v655, %v651
    %v796 = vpack.c.b16 %v656, %v652
    %v797 = vpack.c.b16 %v661, %v657
    %v798 = vpack.c.b16 %v662, %v658
    %v799 = vpack.c.b16 %v663, %v659
    %v800 = vpack.c.b16 %v664, %v660
    %v801 = vpack.c.b16 %v669, %v665
    %v802 = vpack.c.b16 %v670, %v666
    %v803 = vpack.c.b16 %v671, %v667
    %v804 = vpack.c.b16 %v672, %v668
    %v805 = vpack.c.b16 %v677, %v673
    %v806 = vpack.c.b16 %v678, %v674
    %v807 = vpack.c.b16 %v679, %v675
    %v808 = vpack.c.b16 %v680, %v676
    %937 = vmatprep.subr.bf16.mxu0 %v710
    %938 = vmatpush1.bf16.msra.mxu0 %v709
    %939 = vmatprep.subr.bf16.mxu0 %v706
    %940 = vmatpush1.bf16.msra.mxu0 %v705
    %941 = vmatprep.subr.bf16.mxu0 %v702
    %942 = vmatpush1.bf16.msra.mxu0 %v701
    %943 = vmatprep.subr.bf16.mxu0 %v698
    %944 = vmatpush1.bf16.msra.mxu0 %v697
    %945 = vmatprep.subr.bf16.mxu0 %v694
    %946 = vmatpush1.bf16.msra.mxu0 %v693
    %947 = vmatprep.subr.bf16.mxu0 %v690
    %948 = vmatpush1.bf16.msra.mxu0 %v689
    %949 = vmatprep.subr.bf16.mxu0 %v686
    %950 = vmatpush1.bf16.msra.mxu0 %v685
    %951 = vmatprep.subr.bf16.mxu0 %v682
    %952 = vmatpush1.bf16.msra.mxu0 %v681
    %953 = vmatprep.subr.bf16.mxu0 %v742
    %954 = vmatpush2.bf16.msra.mxu0 %v741
    %955 = vmatprep.subr.bf16.mxu0 %v738
    %956 = vmatpush2.bf16.msra.mxu0 %v737
    %957 = vmatprep.subr.bf16.mxu0 %v734
    %958 = vmatpush2.bf16.msra.mxu0 %v733
    %959 = vmatprep.subr.bf16.mxu0 %v730
    %960 = vmatpush2.bf16.msra.mxu0 %v729
    %961 = vmatprep.subr.bf16.mxu0 %v726
    %962 = vmatpush2.bf16.msra.mxu0 %v725
    %963 = vmatprep.subr.bf16.mxu0 %v722
    %964 = vmatpush2.bf16.msra.mxu0 %v721
    %965 = vmatprep.subr.bf16.mxu0 %v718
    %966 = vmatpush2.bf16.msra.mxu0 %v717
    %967 = vmatprep.subr.bf16.mxu0 %v714
    %968 = vmatpush2.bf16.msra.mxu0 %v713
    %969 = vmatprep.mubr.bf16.mxu0 %v144
    %970 = vmatmul.mubr.bf16.gmra.mxu0 %v143
    %v971 = vpop.f32.mrf.mxu0
    %v972 = vadd.f32 %v280, %v971
    %v973 = vpop.f32.mrf.mxu0
    %v974 = vadd.f32 %v284, %v973
    %v975 = vpop.f32.mrf.mxu0
    %v976 = vpop.f32.mrf.mxu0
    %977 = vdwg.mxu0
    %978 = vmatprep.subr.bf16.mxu0 %v774
    %979 = vmatpush1.bf16.msra.mxu0 %v773
    %980 = vmatprep.subr.bf16.mxu0 %v770
    %981 = vmatpush1.bf16.msra.mxu0 %v769
    %982 = vmatprep.subr.bf16.mxu0 %v766
    %983 = vmatpush1.bf16.msra.mxu0 %v765
    %984 = vmatprep.subr.bf16.mxu0 %v762
    %985 = vmatpush1.bf16.msra.mxu0 %v761
    %986 = vmatprep.subr.bf16.mxu0 %v758
    %987 = vmatpush1.bf16.msra.mxu0 %v757
    %988 = vmatprep.subr.bf16.mxu0 %v754
    %989 = vmatpush1.bf16.msra.mxu0 %v753
    %990 = vmatprep.subr.bf16.mxu0 %v750
    %991 = vmatpush1.bf16.msra.mxu0 %v749
    %992 = vmatprep.subr.bf16.mxu0 %v746
    %993 = vmatpush1.bf16.msra.mxu0 %v745
    %994 = vmatprep.subr.bf16.mxu0 %v806
    %995 = vmatpush2.bf16.msra.mxu0 %v805
    %996 = vmatprep.subr.bf16.mxu0 %v802
    %997 = vmatpush2.bf16.msra.mxu0 %v801
    %998 = vmatprep.subr.bf16.mxu0 %v798
    %999 = vmatpush2.bf16.msra.mxu0 %v797
    %1000 = vmatprep.subr.bf16.mxu0 %v794
    %1001 = vmatpush2.bf16.msra.mxu0 %v793
    %1002 = vmatprep.subr.bf16.mxu0 %v790
    %1003 = vmatpush2.bf16.msra.mxu0 %v789
    %1004 = vmatprep.subr.bf16.mxu0 %v786
    %1005 = vmatpush2.bf16.msra.mxu0 %v785
    %1006 = vmatprep.subr.bf16.mxu0 %v782
    %1007 = vmatpush2.bf16.msra.mxu0 %v781
    %1008 = vmatprep.subr.bf16.mxu0 %v778
    %1009 = vmatpush2.bf16.msra.mxu0 %v777
    %1010 = vmatprep.mubr.bf16.mxu0 %v146
    %1011 = vmatmul.mubr.bf16.gmra.mxu0 %v145
    %v1012 = vpop.f32.mrf.mxu0
    %v1013 = vadd.f32 %v972, %v1012
    %v1014 = vpop.f32.mrf.mxu0
    %v1015 = vadd.f32 %v974, %v1014
    %v1016 = vpop.f32.mrf.mxu0
    %v1017 = vpop.f32.mrf.mxu0
    %1018 = vdwg.mxu0
    %1019 = vmatprep.subr.bf16.mxu0 %v712
    %1020 = vmatpush1.bf16.msra.mxu0 %v711
    %1021 = vmatprep.subr.bf16.mxu0 %v708
    %1022 = vmatpush1.bf16.msra.mxu0 %v707
    %1023 = vmatprep.subr.bf16.mxu0 %v704
    %1024 = vmatpush1.bf16.msra.mxu0 %v703
    %1025 = vmatprep.subr.bf16.mxu0 %v700
    %1026 = vmatpush1.bf16.msra.mxu0 %v699
    %1027 = vmatprep.subr.bf16.mxu0 %v696
    %1028 = vmatpush1.bf16.msra.mxu0 %v695
    %1029 = vmatprep.subr.bf16.mxu0 %v692
    %1030 = vmatpush1.bf16.msra.mxu0 %v691
    %1031 = vmatprep.subr.bf16.mxu0 %v688
    %1032 = vmatpush1.bf16.msra.mxu0 %v687
    %1033 = vmatprep.subr.bf16.mxu0 %v684
    %1034 = vmatpush1.bf16.msra.mxu0 %v683
    %1035 = vmatprep.subr.bf16.mxu0 %v744
    %1036 = vmatpush2.bf16.msra.mxu0 %v743
    %1037 = vmatprep.subr.bf16.mxu0 %v740
    %1038 = vmatpush2.bf16.msra.mxu0 %v739
    %1039 = vmatprep.subr.bf16.mxu0 %v736
    %1040 = vmatpush2.bf16.msra.mxu0 %v735
    %1041 = vmatprep.subr.bf16.mxu0 %v732
    %1042 = vmatpush2.bf16.msra.mxu0 %v731
    %1043 = vmatprep.subr.bf16.mxu0 %v728
    %1044 = vmatpush2.bf16.msra.mxu0 %v727
    %1045 = vmatprep.subr.bf16.mxu0 %v724
    %1046 = vmatpush2.bf16.msra.mxu0 %v723
    %1047 = vmatprep.subr.bf16.mxu0 %v720
    %1048 = vmatpush2.bf16.msra.mxu0 %v719
    %1049 = vmatprep.subr.bf16.mxu0 %v716
    %1050 = vmatpush2.bf16.msra.mxu0 %v715
    %1051 = vmatprep.mubr.bf16.mxu0 %v144
    %1052 = vmatmul.mubr.bf16.gmra.mxu0 %v143
    %v1053 = vpop.f32.mrf.mxu0
    %v1054 = vadd.f32 %v288, %v1053
    %v1055 = vpop.f32.mrf.mxu0
    %v1056 = vadd.f32 %v292, %v1055
    %v1057 = vpop.f32.mrf.mxu0
    %v1058 = vpop.f32.mrf.mxu0
    %1059 = vdwg.mxu0
    %1060 = vmatprep.subr.bf16.mxu0 %v776
    %1061 = vmatpush1.bf16.msra.mxu0 %v775
    %1062 = vmatprep.subr.bf16.mxu0 %v772
    %1063 = vmatpush1.bf16.msra.mxu0 %v771
    %1064 = vmatprep.subr.bf16.mxu0 %v768
    %1065 = vmatpush1.bf16.msra.mxu0 %v767
    %1066 = vmatprep.subr.bf16.mxu0 %v764
    %1067 = vmatpush1.bf16.msra.mxu0 %v763
    %1068 = vmatprep.subr.bf16.mxu0 %v760
    %1069 = vmatpush1.bf16.msra.mxu0 %v759
    %1070 = vmatprep.subr.bf16.mxu0 %v756
    %1071 = vmatpush1.bf16.msra.mxu0 %v755
    %1072 = vmatprep.subr.bf16.mxu0 %v752
    %1073 = vmatpush1.bf16.msra.mxu0 %v751
    %1074 = vmatprep.subr.bf16.mxu0 %v748
    %1075 = vmatpush1.bf16.msra.mxu0 %v747
    %1076 = vmatprep.subr.bf16.mxu0 %v808
    %1077 = vmatpush2.bf16.msra.mxu0 %v807
    %1078 = vmatprep.subr.bf16.mxu0 %v804
    %1079 = vmatpush2.bf16.msra.mxu0 %v803
    %1080 = vmatprep.subr.bf16.mxu0 %v800
    %1081 = vmatpush2.bf16.msra.mxu0 %v799
    %1082 = vmatprep.subr.bf16.mxu0 %v796
    %1083 = vmatpush2.bf16.msra.mxu0 %v795
    %1084 = vmatprep.subr.bf16.mxu0 %v792
    %1085 = vmatpush2.bf16.msra.mxu0 %v791
    %1086 = vmatprep.subr.bf16.mxu0 %v788
    %1087 = vmatpush2.bf16.msra.mxu0 %v787
    %1088 = vmatprep.subr.bf16.mxu0 %v784
    %1089 = vmatpush2.bf16.msra.mxu0 %v783
    %1090 = vmatprep.subr.bf16.mxu0 %v780
    %1091 = vmatpush2.bf16.msra.mxu0 %v779
    %1092 = vmatprep.mubr.bf16.mxu0 %v146
    %1093 = vmatmul.mubr.bf16.gmra.mxu0 %v145
    %v1094 = vpop.f32.mrf.mxu0
    %v1095 = vadd.f32 %v1054, %v1094
    %v1096 = vpop.f32.mrf.mxu0
    %v1097 = vadd.f32 %v1056, %v1096
    %v1098 = vpop.f32.mrf.mxu0
    %v1099 = vpop.f32.mrf.mxu0
    %1100 = vdwg.mxu0
    %v1101 = vmax.f32 %v1013, 0.0
    %v1102 = vmax.f32 %v1015, 0.0
    %v1103 = vmax.f32 %v1095, 0.0
    %v1104 = vmax.f32 %v1097, 0.0
    %v1105 = vpack.c.bf16 %v1101, %v1101
    %v1106 = vpack.c.bf16 %v1102, %v1102
    %v1107 = vpack.c.bf16 %v1103, %v1103
    %v1108 = vpack.c.bf16 %v1104, %v1104
    %v1109 = vld [vmem:[#allocation7] sm:$0xff]
    %v1110 = vld [vmem:[#allocation7 + $0x8] sm:$0xff]
    %v1111 = vld [vmem:[#allocation7 + $0x10] sm:$0xff]
    %v1112 = vld [vmem:[#allocation7 + $0x18] sm:$0xff]
    %v1113 = vld [vmem:[#allocation7 + $0x20] sm:$0xff]
    %v1114 = vld [vmem:[#allocation7 + $0x28] sm:$0xff]
    %v1115 = vld [vmem:[#allocation7 + $0x30] sm:$0xff]
    %v1116 = vld [vmem:[#allocation7 + $0x38] sm:$0xff]
    %v1117 = vld [vmem:[#allocation7 + $0x40] sm:$0xff]
    %v1118 = vld [vmem:[#allocation7 + $0x48] sm:$0xff]
    %v1119 = vld [vmem:[#allocation7 + $0x50] sm:$0xff]
    %v1120 = vld [vmem:[#allocation7 + $0x58] sm:$0xff]
    %v1121 = vld [vmem:[#allocation7 + $0x60] sm:$0xff]
    %v1122 = vld [vmem:[#allocation7 + $0x68] sm:$0xff]
    %v1123 = vld [vmem:[#allocation7 + $0x70] sm:$0xff]
    %v1124 = vld [vmem:[#allocation7 + $0x78] sm:$0xff]
    %v1125 = vld [vmem:[#allocation7 + $0x80] sm:$0xff]
    %v1126 = vld [vmem:[#allocation7 + $0x88] sm:$0xff]
    %v1127 = vld [vmem:[#allocation7 + $0x90] sm:$0xff]
    %v1128 = vld [vmem:[#allocation7 + $0x98] sm:$0xff]
    %v1129 = vld [vmem:[#allocation7 + $0xa0] sm:$0xff]
    %v1130 = vld [vmem:[#allocation7 + $0xa8] sm:$0xff]
    %v1131 = vld [vmem:[#allocation7 + $0xb0] sm:$0xff]
    %v1132 = vld [vmem:[#allocation7 + $0xb8] sm:$0xff]
    %v1133 = vld [vmem:[#allocation7 + $0xc0] sm:$0xff]
    %v1134 = vld [vmem:[#allocation7 + $0xc8] sm:$0xff]
    %v1135 = vld [vmem:[#allocation7 + $0xd0] sm:$0xff]
    %v1136 = vld [vmem:[#allocation7 + $0xd8] sm:$0xff]
    %v1137 = vld [vmem:[#allocation7 + $0xe0] sm:$0xff]
    %v1138 = vld [vmem:[#allocation7 + $0xe8] sm:$0xff]
    %v1139 = vld [vmem:[#allocation7 + $0xf0] sm:$0xff]
    %v1140 = vld [vmem:[#allocation7 + $0xf8] sm:$0xff]
    %v1141 = vld [vmem:[#allocation7 + $0x100] sm:$0xff]
    %v1142 = vld [vmem:[#allocation7 + $0x108] sm:$0xff]
    %v1143 = vld [vmem:[#allocation7 + $0x110] sm:$0xff]
    %v1144 = vld [vmem:[#allocation7 + $0x118] sm:$0xff]
    %v1145 = vld [vmem:[#allocation7 + $0x120] sm:$0xff]
    %v1146 = vld [vmem:[#allocation7 + $0x128] sm:$0xff]
    %v1147 = vld [vmem:[#allocation7 + $0x130] sm:$0xff]
    %v1148 = vld [vmem:[#allocation7 + $0x138] sm:$0xff]
    %v1149 = vld [vmem:[#allocation7 + $0x140] sm:$0xff]
    %v1150 = vld [vmem:[#allocation7 + $0x148] sm:$0xff]
    %v1151 = vld [vmem:[#allocation7 + $0x150] sm:$0xff]
    %v1152 = vld [vmem:[#allocation7 + $0x158] sm:$0xff]
    %v1153 = vld [vmem:[#allocation7 + $0x160] sm:$0xff]
    %v1154 = vld [vmem:[#allocation7 + $0x168] sm:$0xff]
    %v1155 = vld [vmem:[#allocation7 + $0x170] sm:$0xff]
    %v1156 = vld [vmem:[#allocation7 + $0x178] sm:$0xff]
    %v1157 = vld [vmem:[#allocation7 + $0x180] sm:$0xff]
    %v1158 = vld [vmem:[#allocation7 + $0x188] sm:$0xff]
    %v1159 = vld [vmem:[#allocation7 + $0x190] sm:$0xff]
    %v1160 = vld [vmem:[#allocation7 + $0x198] sm:$0xff]
    %v1161 = vld [vmem:[#allocation7 + $0x1a0] sm:$0xff]
    %v1162 = vld [vmem:[#allocation7 + $0x1a8] sm:$0xff]
    %v1163 = vld [vmem:[#allocation7 + $0x1b0] sm:$0xff]
    %v1164 = vld [vmem:[#allocation7 + $0x1b8] sm:$0xff]
    %v1165 = vld [vmem:[#allocation7 + $0x1c0] sm:$0xff]
    %v1166 = vld [vmem:[#allocation7 + $0x1c8] sm:$0xff]
    %v1167 = vld [vmem:[#allocation7 + $0x1d0] sm:$0xff]
    %v1168 = vld [vmem:[#allocation7 + $0x1d8] sm:$0xff]
    %v1169 = vld [vmem:[#allocation7 + $0x1e0] sm:$0xff]
    %v1170 = vld [vmem:[#allocation7 + $0x1e8] sm:$0xff]
    %v1171 = vld [vmem:[#allocation7 + $0x1f0] sm:$0xff]
    %v1172 = vld [vmem:[#allocation7 + $0x1f8] sm:$0xff]
    %v1173 = vld [vmem:[#allocation9] sm:$0x3]
    %v1175 = vlaneseq
    %v1176 = vshrl.u32 %v1175, 7
    %v1177 = vsub.s32 0, %v1176
    %v1178 = vrot.slane %v1173, %v1177
    %v1179 = vlaneseq
    %v1180 = vshrl.u32 %v1179, 7
    %v1181 = vsub.s32 1, %v1180
    %v1182 = vrot.slane %v1173, %v1181
    %v1249 = vunpack.c.l.b16 %v1109
    %v1250 = vunpack.c.h.b16 %v1109
    %v1251 = vunpack.c.l.b16 %v1110
    %v1252 = vunpack.c.h.b16 %v1110
    %v1253 = vunpack.c.l.b16 %v1111
    %v1254 = vunpack.c.h.b16 %v1111
    %v1255 = vunpack.c.l.b16 %v1112
    %v1256 = vunpack.c.h.b16 %v1112
    %v1257 = vunpack.c.l.b16 %v1113
    %v1258 = vunpack.c.h.b16 %v1113
    %v1259 = vunpack.c.l.b16 %v1114
    %v1260 = vunpack.c.h.b16 %v1114
    %v1261 = vunpack.c.l.b16 %v1115
    %v1262 = vunpack.c.h.b16 %v1115
    %v1263 = vunpack.c.l.b16 %v1116
    %v1264 = vunpack.c.h.b16 %v1116
    %v1265 = vunpack.c.l.b16 %v1117
    %v1266 = vunpack.c.h.b16 %v1117
    %v1267 = vunpack.c.l.b16 %v1118
    %v1268 = vunpack.c.h.b16 %v1118
    %v1269 = vunpack.c.l.b16 %v1119
    %v1270 = vunpack.c.h.b16 %v1119
    %v1271 = vunpack.c.l.b16 %v1120
    %v1272 = vunpack.c.h.b16 %v1120
    %v1273 = vunpack.c.l.b16 %v1121
    %v1274 = vunpack.c.h.b16 %v1121
    %v1275 = vunpack.c.l.b16 %v1122
    %v1276 = vunpack.c.h.b16 %v1122
    %v1277 = vunpack.c.l.b16 %v1123
    %v1278 = vunpack.c.h.b16 %v1123
    %v1279 = vunpack.c.l.b16 %v1124
    %v1280 = vunpack.c.h.b16 %v1124
    %v1281 = vunpack.c.l.b16 %v1125
    %v1282 = vunpack.c.h.b16 %v1125
    %v1283 = vunpack.c.l.b16 %v1126
    %v1284 = vunpack.c.h.b16 %v1126
    %v1285 = vunpack.c.l.b16 %v1127
    %v1286 = vunpack.c.h.b16 %v1127
    %v1287 = vunpack.c.l.b16 %v1128
    %v1288 = vunpack.c.h.b16 %v1128
    %v1289 = vunpack.c.l.b16 %v1129
    %v1290 = vunpack.c.h.b16 %v1129
    %v1291 = vunpack.c.l.b16 %v1130
    %v1292 = vunpack.c.h.b16 %v1130
    %v1293 = vunpack.c.l.b16 %v1131
    %v1294 = vunpack.c.h.b16 %v1131
    %v1295 = vunpack.c.l.b16 %v1132
    %v1296 = vunpack.c.h.b16 %v1132
    %v1297 = vunpack.c.l.b16 %v1133
    %v1298 = vunpack.c.h.b16 %v1133
    %v1299 = vunpack.c.l.b16 %v1134
    %v1300 = vunpack.c.h.b16 %v1134
    %v1301 = vunpack.c.l.b16 %v1135
    %v1302 = vunpack.c.h.b16 %v1135
    %v1303 = vunpack.c.l.b16 %v1136
    %v1304 = vunpack.c.h.b16 %v1136
    %v1305 = vunpack.c.l.b16 %v1137
    %v1306 = vunpack.c.h.b16 %v1137
    %v1307 = vunpack.c.l.b16 %v1138
    %v1308 = vunpack.c.h.b16 %v1138
    %v1309 = vunpack.c.l.b16 %v1139
    %v1310 = vunpack.c.h.b16 %v1139
    %v1311 = vunpack.c.l.b16 %v1140
    %v1312 = vunpack.c.h.b16 %v1140
    %v1313 = vunpack.c.l.b16 %v1141
    %v1314 = vunpack.c.h.b16 %v1141
    %v1315 = vunpack.c.l.b16 %v1142
    %v1316 = vunpack.c.h.b16 %v1142
    %v1317 = vunpack.c.l.b16 %v1143
    %v1318 = vunpack.c.h.b16 %v1143
    %v1319 = vunpack.c.l.b16 %v1144
    %v1320 = vunpack.c.h.b16 %v1144
    %v1321 = vunpack.c.l.b16 %v1145
    %v1322 = vunpack.c.h.b16 %v1145
    %v1323 = vunpack.c.l.b16 %v1146
    %v1324 = vunpack.c.h.b16 %v1146
    %v1325 = vunpack.c.l.b16 %v1147
    %v1326 = vunpack.c.h.b16 %v1147
    %v1327 = vunpack.c.l.b16 %v1148
    %v1328 = vunpack.c.h.b16 %v1148
    %v1329 = vunpack.c.l.b16 %v1149
    %v1330 = vunpack.c.h.b16 %v1149
    %v1331 = vunpack.c.l.b16 %v1150
    %v1332 = vunpack.c.h.b16 %v1150
    %v1333 = vunpack.c.l.b16 %v1151
    %v1334 = vunpack.c.h.b16 %v1151
    %v1335 = vunpack.c.l.b16 %v1152
    %v1336 = vunpack.c.h.b16 %v1152
    %v1337 = vunpack.c.l.b16 %v1153
    %v1338 = vunpack.c.h.b16 %v1153
    %v1339 = vunpack.c.l.b16 %v1154
    %v1340 = vunpack.c.h.b16 %v1154
    %v1341 = vunpack.c.l.b16 %v1155
    %v1342 = vunpack.c.h.b16 %v1155
    %v1343 = vunpack.c.l.b16 %v1156
    %v1344 = vunpack.c.h.b16 %v1156
    %v1345 = vunpack.c.l.b16 %v1157
    %v1346 = vunpack.c.h.b16 %v1157
    %v1347 = vunpack.c.l.b16 %v1158
    %v1348 = vunpack.c.h.b16 %v1158
    %v1349 = vunpack.c.l.b16 %v1159
    %v1350 = vunpack.c.h.b16 %v1159
    %v1351 = vunpack.c.l.b16 %v1160
    %v1352 = vunpack.c.h.b16 %v1160
    %v1353 = vunpack.c.l.b16 %v1161
    %v1354 = vunpack.c.h.b16 %v1161
    %v1355 = vunpack.c.l.b16 %v1162
    %v1356 = vunpack.c.h.b16 %v1162
    %v1357 = vunpack.c.l.b16 %v1163
    %v1358 = vunpack.c.h.b16 %v1163
    %v1359 = vunpack.c.l.b16 %v1164
    %v1360 = vunpack.c.h.b16 %v1164
    %v1361 = vunpack.c.l.b16 %v1165
    %v1362 = vunpack.c.h.b16 %v1165
    %v1363 = vunpack.c.l.b16 %v1166
    %v1364 = vunpack.c.h.b16 %v1166
    %v1365 = vunpack.c.l.b16 %v1167
    %v1366 = vunpack.c.h.b16 %v1167
    %v1367 = vunpack.c.l.b16 %v1168
    %v1368 = vunpack.c.h.b16 %v1168
    %v1369 = vunpack.c.l.b16 %v1169
    %v1370 = vunpack.c.h.b16 %v1169
    %v1371 = vunpack.c.l.b16 %v1170
    %v1372 = vunpack.c.h.b16 %v1170
    %v1373 = vunpack.c.l.b16 %v1171
    %v1374 = vunpack.c.h.b16 %v1171
    %v1375 = vunpack.c.l.b16 %v1172
    %v1376 = vunpack.c.h.b16 %v1172
    %v1377 = vpack.c.b16 %v1251, %v1249
    %v1378 = vpack.c.b16 %v1252, %v1250
    %v1379 = vpack.c.b16 %v1255, %v1253
    %v1380 = vpack.c.b16 %v1256, %v1254
    %v1381 = vpack.c.b16 %v1259, %v1257
    %v1382 = vpack.c.b16 %v1260, %v1258
    %v1383 = vpack.c.b16 %v1263, %v1261
    %v1384 = vpack.c.b16 %v1264, %v1262
    %v1385 = vpack.c.b16 %v1267, %v1265
    %v1386 = vpack.c.b16 %v1268, %v1266
    %v1387 = vpack.c.b16 %v1271, %v1269
    %v1388 = vpack.c.b16 %v1272, %v1270
    %v1389 = vpack.c.b16 %v1275, %v1273
    %v1390 = vpack.c.b16 %v1276, %v1274
    %v1391 = vpack.c.b16 %v1279, %v1277
    %v1392 = vpack.c.b16 %v1280, %v1278
    %v1393 = vpack.c.b16 %v1283, %v1281
    %v1394 = vpack.c.b16 %v1284, %v1282
    %v1395 = vpack.c.b16 %v1287, %v1285
    %v1396 = vpack.c.b16 %v1288, %v1286
    %v1397 = vpack.c.b16 %v1291, %v1289
    %v1398 = vpack.c.b16 %v1292, %v1290
    %v1399 = vpack.c.b16 %v1295, %v1293
    %v1400 = vpack.c.b16 %v1296, %v1294
    %v1401 = vpack.c.b16 %v1299, %v1297
    %v1402 = vpack.c.b16 %v1300, %v1298
    %v1403 = vpack.c.b16 %v1303, %v1301
    %v1404 = vpack.c.b16 %v1304, %v1302
    %v1405 = vpack.c.b16 %v1307, %v1305
    %v1406 = vpack.c.b16 %v1308, %v1306
    %v1407 = vpack.c.b16 %v1311, %v1309
    %v1408 = vpack.c.b16 %v1312, %v1310
    %v1409 = vpack.c.b16 %v1315, %v1313
    %v1410 = vpack.c.b16 %v1316, %v1314
    %v1411 = vpack.c.b16 %v1319, %v1317
    %v1412 = vpack.c.b16 %v1320, %v1318
    %v1413 = vpack.c.b16 %v1323, %v1321
    %v1414 = vpack.c.b16 %v1324, %v1322
    %v1415 = vpack.c.b16 %v1327, %v1325
    %v1416 = vpack.c.b16 %v1328, %v1326
    %v1417 = vpack.c.b16 %v1331, %v1329
    %v1418 = vpack.c.b16 %v1332, %v1330
    %v1419 = vpack.c.b16 %v1335, %v1333
    %v1420 = vpack.c.b16 %v1336, %v1334
    %v1421 = vpack.c.b16 %v1339, %v1337
    %v1422 = vpack.c.b16 %v1340, %v1338
    %v1423 = vpack.c.b16 %v1343, %v1341
    %v1424 = vpack.c.b16 %v1344, %v1342
    %v1425 = vpack.c.b16 %v1347, %v1345
    %v1426 = vpack.c.b16 %v1348, %v1346
    %v1427 = vpack.c.b16 %v1351, %v1349
    %v1428 = vpack.c.b16 %v1352, %v1350
    %v1429 = vpack.c.b16 %v1355, %v1353
    %v1430 = vpack.c.b16 %v1356, %v1354
    %v1431 = vpack.c.b16 %v1359, %v1357
    %v1432 = vpack.c.b16 %v1360, %v1358
    %v1433 = vpack.c.b16 %v1363, %v1361
    %v1434 = vpack.c.b16 %v1364, %v1362
    %v1435 = vpack.c.b16 %v1367, %v1365
    %v1436 = vpack.c.b16 %v1368, %v1366
    %v1437 = vpack.c.b16 %v1371, %v1369
    %v1438 = vpack.c.b16 %v1372, %v1370
    %v1439 = vpack.c.b16 %v1375, %v1373
    %v1440 = vpack.c.b16 %v1376, %v1374
    %1505 = vmatprep.subr.bf16.mxu0 %v1392
    %1506 = vmatpush1.bf16.msra.mxu0 %v1391
    %1507 = vmatprep.subr.bf16.mxu0 %v1390
    %1508 = vmatpush1.bf16.msra.mxu0 %v1389
    %1509 = vmatprep.subr.bf16.mxu0 %v1388
    %1510 = vmatpush1.bf16.msra.mxu0 %v1387
    %1511 = vmatprep.subr.bf16.mxu0 %v1386
    %1512 = vmatpush1.bf16.msra.mxu0 %v1385
    %1513 = vmatprep.subr.bf16.mxu0 %v1384
    %1514 = vmatpush1.bf16.msra.mxu0 %v1383
    %1515 = vmatprep.subr.bf16.mxu0 %v1382
    %1516 = vmatpush1.bf16.msra.mxu0 %v1381
    %1517 = vmatprep.subr.bf16.mxu0 %v1380
    %1518 = vmatpush1.bf16.msra.mxu0 %v1379
    %1519 = vmatprep.subr.bf16.mxu0 %v1378
    %1520 = vmatpush1.bf16.msra.mxu0 %v1377
    %1521 = vmatprep.subr.bf16.mxu0 %v1408
    %1522 = vmatpush2.bf16.msra.mxu0 %v1407
    %1523 = vmatprep.subr.bf16.mxu0 %v1406
    %1524 = vmatpush2.bf16.msra.mxu0 %v1405
    %1525 = vmatprep.subr.bf16.mxu0 %v1404
    %1526 = vmatpush2.bf16.msra.mxu0 %v1403
    %1527 = vmatprep.subr.bf16.mxu0 %v1402
    %1528 = vmatpush2.bf16.msra.mxu0 %v1401
    %1529 = vmatprep.subr.bf16.mxu0 %v1400
    %1530 = vmatpush2.bf16.msra.mxu0 %v1399
    %1531 = vmatprep.subr.bf16.mxu0 %v1398
    %1532 = vmatpush2.bf16.msra.mxu0 %v1397
    %1533 = vmatprep.subr.bf16.mxu0 %v1396
    %1534 = vmatpush2.bf16.msra.mxu0 %v1395
    %1535 = vmatprep.subr.bf16.mxu0 %v1394
    %1536 = vmatpush2.bf16.msra.mxu0 %v1393
    %1537 = vmatprep.mubr.bf16.mxu0 %v1106
    %1538 = vmatmul.mubr.bf16.gmra.mxu0 %v1105
    %v1539 = vpop.f32.mrf.mxu0
    %v1540 = vadd.f32 %v1178, %v1539
    %v1541 = vpop.f32.mrf.mxu0
    %v1542 = vadd.f32 %v1182, %v1541
    %v1543 = vpop.f32.mrf.mxu0
    %v1544 = vpop.f32.mrf.mxu0
    %1545 = vdwg.mxu0
    %1546 = vmatprep.subr.bf16.mxu0 %v1424
    %1547 = vmatpush1.bf16.msra.mxu0 %v1423
    %1548 = vmatprep.subr.bf16.mxu0 %v1422
    %1549 = vmatpush1.bf16.msra.mxu0 %v1421
    %1550 = vmatprep.subr.bf16.mxu0 %v1420
    %1551 = vmatpush1.bf16.msra.mxu0 %v1419
    %1552 = vmatprep.subr.bf16.mxu0 %v1418
    %1553 = vmatpush1.bf16.msra.mxu0 %v1417
    %1554 = vmatprep.subr.bf16.mxu0 %v1416
    %1555 = vmatpush1.bf16.msra.mxu0 %v1415
    %1556 = vmatprep.subr.bf16.mxu0 %v1414
    %1557 = vmatpush1.bf16.msra.mxu0 %v1413
    %1558 = vmatprep.subr.bf16.mxu0 %v1412
    %1559 = vmatpush1.bf16.msra.mxu0 %v1411
    %1560 = vmatprep.subr.bf16.mxu0 %v1410
    %1561 = vmatpush1.bf16.msra.mxu0 %v1409
    %1562 = vmatprep.subr.bf16.mxu0 %v1440
    %1563 = vmatpush2.bf16.msra.mxu0 %v1439
    %1564 = vmatprep.subr.bf16.mxu0 %v1438
    %1565 = vmatpush2.bf16.msra.mxu0 %v1437
    %1566 = vmatprep.subr.bf16.mxu0 %v1436
    %1567 = vmatpush2.bf16.msra.mxu0 %v1435
    %1568 = vmatprep.subr.bf16.mxu0 %v1434
    %1569 = vmatpush2.bf16.msra.mxu0 %v1433
    %1570 = vmatprep.subr.bf16.mxu0 %v1432
    %1571 = vmatpush2.bf16.msra.mxu0 %v1431
    %1572 = vmatprep.subr.bf16.mxu0 %v1430
    %1573 = vmatpush2.bf16.msra.mxu0 %v1429
    %1574 = vmatprep.subr.bf16.mxu0 %v1428
    %1575 = vmatpush2.bf16.msra.mxu0 %v1427
    %1576 = vmatprep.subr.bf16.mxu0 %v1426
    %1577 = vmatpush2.bf16.msra.mxu0 %v1425
    %1578 = vmatprep.mubr.bf16.mxu0 %v1108
    %1579 = vmatmul.mubr.bf16.gmra.mxu0 %v1107
    %v1580 = vpop.f32.mrf.mxu0
    %v1581 = vadd.f32 %v1540, %v1580
    %v1582 = vpop.f32.mrf.mxu0
    %v1583 = vadd.f32 %v1542, %v1582
    %v1584 = vpop.f32.mrf.mxu0
    %v1585 = vpop.f32.mrf.mxu0
    %1586 = vdwg.mxu0
    %v1587 = vmax.f32 %v1583, 0.0
    %v1588 = vand.u32 2147483647, %v1583
    %v1589 = vsub.f32 0.0, %v1588
    %v1590 = vmul.f32 %v1589, 1.442695
    %v1591 = vpow.pop %v1590
    %v1592 = vadd.f32 %v1591, 1.0
    %v1593 = vlog2.pop %v1592
    %v1594 = vmul.f32 %v1593, 0.6931472
    %v1595 = vmul.f32 -0.5, %v1591
    %v1596 = vadd.f32 %v1595, 1.0
    %v1597 = vmul.f32 %v1596, %v1591
    %v1598 = vand.u32 2147483647, %v1591
    %vm1599 = vcmp.lt.f32.partialorder %v1598, 0.0004427343
    %v1600 = vsel %vm1599, %v1597, %v1594
    %v1601 = vadd.f32 %v1587, %v1600
    %v1602 = vadd.f32 %v1601, 1e-06
    %v1603 = vld [vmem:[#allocation4] sm:$0xff]
    %v1604 = vld [vmem:[#allocation4 + $0x8] sm:$0xff]
    %v1605 = vld [vmem:[#allocation4 + $0x10] sm:$0xff]
    %v1606 = vld [vmem:[#allocation4 + $0x18] sm:$0xff]
    %v1607 = vpack.c.bf16 %v1603, %v1603
    %v1608 = vpack.c.bf16 %v1604, %v1604
    %v1609 = vpack.c.bf16 %v1605, %v1605
    %v1610 = vpack.c.bf16 %v1606, %v1606
    %v1611 = vld [vmem:[#allocation10] sm:$0xff]
    %v1612 = vld [vmem:[#allocation10 + $0x8] sm:$0xff]
    %v1613 = vld [vmem:[#allocation10 + $0x10] sm:$0xff]
    %v1614 = vld [vmem:[#allocation10 + $0x18] sm:$0xff]
    %v1615 = vld [vmem:[#allocation10 + $0x20] sm:$0xff]
    %v1616 = vld [vmem:[#allocation10 + $0x28] sm:$0xff]
    %v1617 = vld [vmem:[#allocation10 + $0x30] sm:$0xff]
    %v1618 = vld [vmem:[#allocation10 + $0x38] sm:$0xff]
    %v1619 = vld [vmem:[#allocation10 + $0x40] sm:$0xff]
    %v1620 = vld [vmem:[#allocation10 + $0x48] sm:$0xff]
    %v1621 = vld [vmem:[#allocation10 + $0x50] sm:$0xff]
    %v1622 = vld [vmem:[#allocation10 + $0x58] sm:$0xff]
    %v1623 = vld [vmem:[#allocation10 + $0x60] sm:$0xff]
    %v1624 = vld [vmem:[#allocation10 + $0x68] sm:$0xff]
    %v1625 = vld [vmem:[#allocation10 + $0x70] sm:$0xff]
    %v1626 = vld [vmem:[#allocation10 + $0x78] sm:$0xff]
    %v1627 = vld [vmem:[#allocation10 + $0x80] sm:$0xff]
    %v1628 = vld [vmem:[#allocation10 + $0x88] sm:$0xff]
    %v1629 = vld [vmem:[#allocation10 + $0x90] sm:$0xff]
    %v1630 = vld [vmem:[#allocation10 + $0x98] sm:$0xff]
    %v1631 = vld [vmem:[#allocation10 + $0xa0] sm:$0xff]
    %v1632 = vld [vmem:[#allocation10 + $0xa8] sm:$0xff]
    %v1633 = vld [vmem:[#allocation10 + $0xb0] sm:$0xff]
    %v1634 = vld [vmem:[#allocation10 + $0xb8] sm:$0xff]
    %v1635 = vld [vmem:[#allocation10 + $0xc0] sm:$0xff]
    %v1636 = vld [vmem:[#allocation10 + $0xc8] sm:$0xff]
    %v1637 = vld [vmem:[#allocation10 + $0xd0] sm:$0xff]
    %v1638 = vld [vmem:[#allocation10 + $0xd8] sm:$0xff]
    %v1639 = vld [vmem:[#allocation10 + $0xe0] sm:$0xff]
    %v1640 = vld [vmem:[#allocation10 + $0xe8] sm:$0xff]
    %v1641 = vld [vmem:[#allocation10 + $0xf0] sm:$0xff]
    %v1642 = vld [vmem:[#allocation10 + $0xf8] sm:$0xff]
    %v1643 = vld [vmem:[#allocation10 + $0x100] sm:$0xff]
    %v1644 = vld [vmem:[#allocation10 + $0x108] sm:$0xff]
    %v1645 = vld [vmem:[#allocation10 + $0x110] sm:$0xff]
    %v1646 = vld [vmem:[#allocation10 + $0x118] sm:$0xff]
    %v1647 = vld [vmem:[#allocation10 + $0x120] sm:$0xff]
    %v1648 = vld [vmem:[#allocation10 + $0x128] sm:$0xff]
    %v1649 = vld [vmem:[#allocation10 + $0x130] sm:$0xff]
    %v1650 = vld [vmem:[#allocation10 + $0x138] sm:$0xff]
    %v1651 = vld [vmem:[#allocation10 + $0x140] sm:$0xff]
    %v1652 = vld [vmem:[#allocation10 + $0x148] sm:$0xff]
    %v1653 = vld [vmem:[#allocation10 + $0x150] sm:$0xff]
    %v1654 = vld [vmem:[#allocation10 + $0x158] sm:$0xff]
    %v1655 = vld [vmem:[#allocation10 + $0x160] sm:$0xff]
    %v1656 = vld [vmem:[#allocation10 + $0x168] sm:$0xff]
    %v1657 = vld [vmem:[#allocation10 + $0x170] sm:$0xff]
    %v1658 = vld [vmem:[#allocation10 + $0x178] sm:$0xff]
    %v1659 = vld [vmem:[#allocation10 + $0x180] sm:$0xff]
    %v1660 = vld [vmem:[#allocation10 + $0x188] sm:$0xff]
    %v1661 = vld [vmem:[#allocation10 + $0x190] sm:$0xff]
    %v1662 = vld [vmem:[#allocation10 + $0x198] sm:$0xff]
    %v1663 = vld [vmem:[#allocation10 + $0x1a0] sm:$0xff]
    %v1664 = vld [vmem:[#allocation10 + $0x1a8] sm:$0xff]
    %v1665 = vld [vmem:[#allocation10 + $0x1b0] sm:$0xff]
    %v1666 = vld [vmem:[#allocation10 + $0x1b8] sm:$0xff]
    %v1667 = vld [vmem:[#allocation10 + $0x1c0] sm:$0xff]
    %v1668 = vld [vmem:[#allocation10 + $0x1c8] sm:$0xff]
    %v1669 = vld [vmem:[#allocation10 + $0x1d0] sm:$0xff]
    %v1670 = vld [vmem:[#allocation10 + $0x1d8] sm:$0xff]
    %v1671 = vld [vmem:[#allocation10 + $0x1e0] sm:$0xff]
    %v1672 = vld [vmem:[#allocation10 + $0x1e8] sm:$0xff]
    %v1673 = vld [vmem:[#allocation10 + $0x1f0] sm:$0xff]
    %v1674 = vld [vmem:[#allocation10 + $0x1f8] sm:$0xff]
    %v1675 = vld [vmem:[#allocation10 + $0x200] sm:$0xff]
    %v1676 = vld [vmem:[#allocation10 + $0x208] sm:$0xff]
    %v1677 = vld [vmem:[#allocation10 + $0x210] sm:$0xff]
    %v1678 = vld [vmem:[#allocation10 + $0x218] sm:$0xff]
    %v1679 = vld [vmem:[#allocation10 + $0x220] sm:$0xff]
    %v1680 = vld [vmem:[#allocation10 + $0x228] sm:$0xff]
    %v1681 = vld [vmem:[#allocation10 + $0x230] sm:$0xff]
    %v1682 = vld [vmem:[#allocation10 + $0x238] sm:$0xff]
    %v1683 = vld [vmem:[#allocation10 + $0x240] sm:$0xff]
    %v1684 = vld [vmem:[#allocation10 + $0x248] sm:$0xff]
    %v1685 = vld [vmem:[#allocation10 + $0x250] sm:$0xff]
    %v1686 = vld [vmem:[#allocation10 + $0x258] sm:$0xff]
    %v1687 = vld [vmem:[#allocation10 + $0x260] sm:$0xff]
    %v1688 = vld [vmem:[#allocation10 + $0x268] sm:$0xff]
    %v1689 = vld [vmem:[#allocation10 + $0x270] sm:$0xff]
    %v1690 = vld [vmem:[#allocation10 + $0x278] sm:$0xff]
    %v1691 = vld [vmem:[#allocation10 + $0x280] sm:$0xff]
    %v1692 = vld [vmem:[#allocation10 + $0x288] sm:$0xff]
    %v1693 = vld [vmem:[#allocation10 + $0x290] sm:$0xff]
    %v1694 = vld [vmem:[#allocation10 + $0x298] sm:$0xff]
    %v1695 = vld [vmem:[#allocation10 + $0x2a0] sm:$0xff]
    %v1696 = vld [vmem:[#allocation10 + $0x2a8] sm:$0xff]
    %v1697 = vld [vmem:[#allocation10 + $0x2b0] sm:$0xff]
    %v1698 = vld [vmem:[#allocation10 + $0x2b8] sm:$0xff]
    %v1699 = vld [vmem:[#allocation10 + $0x2c0] sm:$0xff]
    %v1700 = vld [vmem:[#allocation10 + $0x2c8] sm:$0xff]
    %v1701 = vld [vmem:[#allocation10 + $0x2d0] sm:$0xff]
    %v1702 = vld [vmem:[#allocation10 + $0x2d8] sm:$0xff]
    %v1703 = vld [vmem:[#allocation10 + $0x2e0] sm:$0xff]
    %v1704 = vld [vmem:[#allocation10 + $0x2e8] sm:$0xff]
    %v1705 = vld [vmem:[#allocation10 + $0x2f0] sm:$0xff]
    %v1706 = vld [vmem:[#allocation10 + $0x2f8] sm:$0xff]
    %v1707 = vld [vmem:[#allocation10 + $0x300] sm:$0xff]
    %v1708 = vld [vmem:[#allocation10 + $0x308] sm:$0xff]
    %v1709 = vld [vmem:[#allocation10 + $0x310] sm:$0xff]
    %v1710 = vld [vmem:[#allocation10 + $0x318] sm:$0xff]
    %v1711 = vld [vmem:[#allocation10 + $0x320] sm:$0xff]
    %v1712 = vld [vmem:[#allocation10 + $0x328] sm:$0xff]
    %v1713 = vld [vmem:[#allocation10 + $0x330] sm:$0xff]
    %v1714 = vld [vmem:[#allocation10 + $0x338] sm:$0xff]
    %v1715 = vld [vmem:[#allocation10 + $0x340] sm:$0xff]
    %v1716 = vld [vmem:[#allocation10 + $0x348] sm:$0xff]
    %v1717 = vld [vmem:[#allocation10 + $0x350] sm:$0xff]
    %v1718 = vld [vmem:[#allocation10 + $0x358] sm:$0xff]
    %v1719 = vld [vmem:[#allocation10 + $0x360] sm:$0xff]
    %v1720 = vld [vmem:[#allocation10 + $0x368] sm:$0xff]
    %v1721 = vld [vmem:[#allocation10 + $0x370] sm:$0xff]
    %v1722 = vld [vmem:[#allocation10 + $0x378] sm:$0xff]
    %v1723 = vld [vmem:[#allocation10 + $0x380] sm:$0xff]
    %v1724 = vld [vmem:[#allocation10 + $0x388] sm:$0xff]
    %v1725 = vld [vmem:[#allocation10 + $0x390] sm:$0xff]
    %v1726 = vld [vmem:[#allocation10 + $0x398] sm:$0xff]
    %v1727 = vld [vmem:[#allocation10 + $0x3a0] sm:$0xff]
    %v1728 = vld [vmem:[#allocation10 + $0x3a8] sm:$0xff]
    %v1729 = vld [vmem:[#allocation10 + $0x3b0] sm:$0xff]
    %v1730 = vld [vmem:[#allocation10 + $0x3b8] sm:$0xff]
    %v1731 = vld [vmem:[#allocation10 + $0x3c0] sm:$0xff]
    %v1732 = vld [vmem:[#allocation10 + $0x3c8] sm:$0xff]
    %v1733 = vld [vmem:[#allocation10 + $0x3d0] sm:$0xff]
    %v1734 = vld [vmem:[#allocation10 + $0x3d8] sm:$0xff]
    %v1735 = vld [vmem:[#allocation10 + $0x3e0] sm:$0xff]
    %v1736 = vld [vmem:[#allocation10 + $0x3e8] sm:$0xff]
    %v1737 = vld [vmem:[#allocation10 + $0x3f0] sm:$0xff]
    %v1738 = vld [vmem:[#allocation10 + $0x3f8] sm:$0xff]
    %v1739 = vld [vmem:[%s7] sm:$0xf]
    %v1741 = vlaneseq
    %v1742 = vshrl.u32 %v1741, 7
    %v1743 = vsub.s32 0, %v1742
    %v1744 = vrot.slane %v1739, %v1743
    %v1745 = vlaneseq
    %v1746 = vshrl.u32 %v1745, 7
    %v1747 = vsub.s32 1, %v1746
    %v1748 = vrot.slane %v1739, %v1747
    %v1749 = vlaneseq
    %v1750 = vshrl.u32 %v1749, 7
    %v1751 = vsub.s32 2, %v1750
    %v1752 = vrot.slane %v1739, %v1751
    %v1753 = vlaneseq
    %v1754 = vshrl.u32 %v1753, 7
    %v1755 = vsub.s32 3, %v1754
    %v1756 = vrot.slane %v1739, %v1755
    %v1889 = vunpack.c.l.b16 %v1611
    %v1890 = vunpack.c.h.b16 %v1611
    %v1891 = vunpack.c.l.b16 %v1612
    %v1892 = vunpack.c.h.b16 %v1612
    %v1893 = vunpack.c.l.b16 %v1613
    %v1894 = vunpack.c.h.b16 %v1613
    %v1895 = vunpack.c.l.b16 %v1614
    %v1896 = vunpack.c.h.b16 %v1614
    %v1897 = vunpack.c.l.b16 %v1615
    %v1898 = vunpack.c.h.b16 %v1615
    %v1899 = vunpack.c.l.b16 %v1616
    %v1900 = vunpack.c.h.b16 %v1616
    %v1901 = vunpack.c.l.b16 %v1617
    %v1902 = vunpack.c.h.b16 %v1617
    %v1903 = vunpack.c.l.b16 %v1618
    %v1904 = vunpack.c.h.b16 %v1618
    %v1905 = vunpack.c.l.b16 %v1619
    %v1906 = vunpack.c.h.b16 %v1619
    %v1907 = vunpack.c.l.b16 %v1620
    %v1908 = vunpack.c.h.b16 %v1620
    %v1909 = vunpack.c.l.b16 %v1621
    %v1910 = vunpack.c.h.b16 %v1621
    %v1911 = vunpack.c.l.b16 %v1622
    %v1912 = vunpack.c.h.b16 %v1622
    %v1913 = vunpack.c.l.b16 %v1623
    %v1914 = vunpack.c.h.b16 %v1623
    %v1915 = vunpack.c.l.b16 %v1624
    %v1916 = vunpack.c.h.b16 %v1624
    %v1917 = vunpack.c.l.b16 %v1625
    %v1918 = vunpack.c.h.b16 %v1625
    %v1919 = vunpack.c.l.b16 %v1626
    %v1920 = vunpack.c.h.b16 %v1626
    %v1921 = vunpack.c.l.b16 %v1627
    %v1922 = vunpack.c.h.b16 %v1627
    %v1923 = vunpack.c.l.b16 %v1628
    %v1924 = vunpack.c.h.b16 %v1628
    %v1925 = vunpack.c.l.b16 %v1629
    %v1926 = vunpack.c.h.b16 %v1629
    %v1927 = vunpack.c.l.b16 %v1630
    %v1928 = vunpack.c.h.b16 %v1630
    %v1929 = vunpack.c.l.b16 %v1631
    %v1930 = vunpack.c.h.b16 %v1631
    %v1931 = vunpack.c.l.b16 %v1632
    %v1932 = vunpack.c.h.b16 %v1632
    %v1933 = vunpack.c.l.b16 %v1633
    %v1934 = vunpack.c.h.b16 %v1633
    %v1935 = vunpack.c.l.b16 %v1634
    %v1936 = vunpack.c.h.b16 %v1634
    %v1937 = vunpack.c.l.b16 %v1635
    %v1938 = vunpack.c.h.b16 %v1635
    %v1939 = vunpack.c.l.b16 %v1636
    %v1940 = vunpack.c.h.b16 %v1636
    %v1941 = vunpack.c.l.b16 %v1637
    %v1942 = vunpack.c.h.b16 %v1637
    %v1943 = vunpack.c.l.b16 %v1638
    %v1944 = vunpack.c.h.b16 %v1638
    %v1945 = vunpack.c.l.b16 %v1639
    %v1946 = vunpack.c.h.b16 %v1639
    %v1947 = vunpack.c.l.b16 %v1640
    %v1948 = vunpack.c.h.b16 %v1640
    %v1949 = vunpack.c.l.b16 %v1641
    %v1950 = vunpack.c.h.b16 %v1641
    %v1951 = vunpack.c.l.b16 %v1642
    %v1952 = vunpack.c.h.b16 %v1642
    %v1953 = vunpack.c.l.b16 %v1643
    %v1954 = vunpack.c.h.b16 %v1643
    %v1955 = vunpack.c.l.b16 %v1644
    %v1956 = vunpack.c.h.b16 %v1644
    %v1957 = vunpack.c.l.b16 %v1645
    %v1958 = vunpack.c.h.b16 %v1645
    %v1959 = vunpack.c.l.b16 %v1646
    %v1960 = vunpack.c.h.b16 %v1646
    %v1961 = vunpack.c.l.b16 %v1647
    %v1962 = vunpack.c.h.b16 %v1647
    %v1963 = vunpack.c.l.b16 %v1648
    %v1964 = vunpack.c.h.b16 %v1648
    %v1965 = vunpack.c.l.b16 %v1649
    %v1966 = vunpack.c.h.b16 %v1649
    %v1967 = vunpack.c.l.b16 %v1650
    %v1968 = vunpack.c.h.b16 %v1650
    %v1969 = vunpack.c.l.b16 %v1651
    %v1970 = vunpack.c.h.b16 %v1651
    %v1971 = vunpack.c.l.b16 %v1652
    %v1972 = vunpack.c.h.b16 %v1652
    %v1973 = vunpack.c.l.b16 %v1653
    %v1974 = vunpack.c.h.b16 %v1653
    %v1975 = vunpack.c.l.b16 %v1654
    %v1976 = vunpack.c.h.b16 %v1654
    %v1977 = vunpack.c.l.b16 %v1655
    %v1978 = vunpack.c.h.b16 %v1655
    %v1979 = vunpack.c.l.b16 %v1656
    %v1980 = vunpack.c.h.b16 %v1656
    %v1981 = vunpack.c.l.b16 %v1657
    %v1982 = vunpack.c.h.b16 %v1657
    %v1983 = vunpack.c.l.b16 %v1658
    %v1984 = vunpack.c.h.b16 %v1658
    %v1985 = vunpack.c.l.b16 %v1659
    %v1986 = vunpack.c.h.b16 %v1659
    %v1987 = vunpack.c.l.b16 %v1660
    %v1988 = vunpack.c.h.b16 %v1660
    %v1989 = vunpack.c.l.b16 %v1661
    %v1990 = vunpack.c.h.b16 %v1661
    %v1991 = vunpack.c.l.b16 %v1662
    %v1992 = vunpack.c.h.b16 %v1662
    %v1993 = vunpack.c.l.b16 %v1663
    %v1994 = vunpack.c.h.b16 %v1663
    %v1995 = vunpack.c.l.b16 %v1664
    %v1996 = vunpack.c.h.b16 %v1664
    %v1997 = vunpack.c.l.b16 %v1665
    %v1998 = vunpack.c.h.b16 %v1665
    %v1999 = vunpack.c.l.b16 %v1666
    %v2000 = vunpack.c.h.b16 %v1666
    %v2001 = vunpack.c.l.b16 %v1667
    %v2002 = vunpack.c.h.b16 %v1667
    %v2003 = vunpack.c.l.b16 %v1668
    %v2004 = vunpack.c.h.b16 %v1668
    %v2005 = vunpack.c.l.b16 %v1669
    %v2006 = vunpack.c.h.b16 %v1669
    %v2007 = vunpack.c.l.b16 %v1670
    %v2008 = vunpack.c.h.b16 %v1670
    %v2009 = vunpack.c.l.b16 %v1671
    %v2010 = vunpack.c.h.b16 %v1671
    %v2011 = vunpack.c.l.b16 %v1672
    %v2012 = vunpack.c.h.b16 %v1672
    %v2013 = vunpack.c.l.b16 %v1673
    %v2014 = vunpack.c.h.b16 %v1673
    %v2015 = vunpack.c.l.b16 %v1674
    %v2016 = vunpack.c.h.b16 %v1674
    %v2017 = vunpack.c.l.b16 %v1675
    %v2018 = vunpack.c.h.b16 %v1675
    %v2019 = vunpack.c.l.b16 %v1676
    %v2020 = vunpack.c.h.b16 %v1676
    %v2021 = vunpack.c.l.b16 %v1677
    %v2022 = vunpack.c.h.b16 %v1677
    %v2023 = vunpack.c.l.b16 %v1678
    %v2024 = vunpack.c.h.b16 %v1678
    %v2025 = vunpack.c.l.b16 %v1679
    %v2026 = vunpack.c.h.b16 %v1679
    %v2027 = vunpack.c.l.b16 %v1680
    %v2028 = vunpack.c.h.b16 %v1680
    %v2029 = vunpack.c.l.b16 %v1681
    %v2030 = vunpack.c.h.b16 %v1681
    %v2031 = vunpack.c.l.b16 %v1682
    %v2032 = vunpack.c.h.b16 %v1682
    %v2033 = vunpack.c.l.b16 %v1683
    %v2034 = vunpack.c.h.b16 %v1683
    %v2035 = vunpack.c.l.b16 %v1684
    %v2036 = vunpack.c.h.b16 %v1684
    %v2037 = vunpack.c.l.b16 %v1685
    %v2038 = vunpack.c.h.b16 %v1685
    %v2039 = vunpack.c.l.b16 %v1686
    %v2040 = vunpack.c.h.b16 %v1686
    %v2041 = vunpack.c.l.b16 %v1687
    %v2042 = vunpack.c.h.b16 %v1687
    %v2043 = vunpack.c.l.b16 %v1688
    %v2044 = vunpack.c.h.b16 %v1688
    %v2045 = vunpack.c.l.b16 %v1689
    %v2046 = vunpack.c.h.b16 %v1689
    %v2047 = vunpack.c.l.b16 %v1690
    %v2048 = vunpack.c.h.b16 %v1690
    %v2049 = vunpack.c.l.b16 %v1691
    %v2050 = vunpack.c.h.b16 %v1691
    %v2051 = vunpack.c.l.b16 %v1692
    %v2052 = vunpack.c.h.b16 %v1692
    %v2053 = vunpack.c.l.b16 %v1693
    %v2054 = vunpack.c.h.b16 %v1693
    %v2055 = vunpack.c.l.b16 %v1694
    %v2056 = vunpack.c.h.b16 %v1694
    %v2057 = vunpack.c.l.b16 %v1695
    %v2058 = vunpack.c.h.b16 %v1695
    %v2059 = vunpack.c.l.b16 %v1696
    %v2060 = vunpack.c.h.b16 %v1696
    %v2061 = vunpack.c.l.b16 %v1697
    %v2062 = vunpack.c.h.b16 %v1697
    %v2063 = vunpack.c.l.b16 %v1698
    %v2064 = vunpack.c.h.b16 %v1698
    %v2065 = vunpack.c.l.b16 %v1699
    %v2066 = vunpack.c.h.b16 %v1699
    %v2067 = vunpack.c.l.b16 %v1700
    %v2068 = vunpack.c.h.b16 %v1700
    %v2069 = vunpack.c.l.b16 %v1701
    %v2070 = vunpack.c.h.b16 %v1701
    %v2071 = vunpack.c.l.b16 %v1702
    %v2072 = vunpack.c.h.b16 %v1702
    %v2073 = vunpack.c.l.b16 %v1703
    %v2074 = vunpack.c.h.b16 %v1703
    %v2075 = vunpack.c.l.b16 %v1704
    %v2076 = vunpack.c.h.b16 %v1704
    %v2077 = vunpack.c.l.b16 %v1705
    %v2078 = vunpack.c.h.b16 %v1705
    %v2079 = vunpack.c.l.b16 %v1706
    %v2080 = vunpack.c.h.b16 %v1706
    %v2081 = vunpack.c.l.b16 %v1707
    %v2082 = vunpack.c.h.b16 %v1707
    %v2083 = vunpack.c.l.b16 %v1708
    %v2084 = vunpack.c.h.b16 %v1708
    %v2085 = vunpack.c.l.b16 %v1709
    %v2086 = vunpack.c.h.b16 %v1709
    %v2087 = vunpack.c.l.b16 %v1710
    %v2088 = vunpack.c.h.b16 %v1710
    %v2089 = vunpack.c.l.b16 %v1711
    %v2090 = vunpack.c.h.b16 %v1711
    %v2091 = vunpack.c.l.b16 %v1712
    %v2092 = vunpack.c.h.b16 %v1712
    %v2093 = vunpack.c.l.b16 %v1713
    %v2094 = vunpack.c.h.b16 %v1713
    %v2095 = vunpack.c.l.b16 %v1714
    %v2096 = vunpack.c.h.b16 %v1714
    %v2097 = vunpack.c.l.b16 %v1715
    %v2098 = vunpack.c.h.b16 %v1715
    %v2099 = vunpack.c.l.b16 %v1716
    %v2100 = vunpack.c.h.b16 %v1716
    %v2101 = vunpack.c.l.b16 %v1717
    %v2102 = vunpack.c.h.b16 %v1717
    %v2103 = vunpack.c.l.b16 %v1718
    %v2104 = vunpack.c.h.b16 %v1718
    %v2105 = vunpack.c.l.b16 %v1719
    %v2106 = vunpack.c.h.b16 %v1719
    %v2107 = vunpack.c.l.b16 %v1720
    %v2108 = vunpack.c.h.b16 %v1720
    %v2109 = vunpack.c.l.b16 %v1721
    %v2110 = vunpack.c.h.b16 %v1721
    %v2111 = vunpack.c.l.b16 %v1722
    %v2112 = vunpack.c.h.b16 %v1722
    %v2113 = vunpack.c.l.b16 %v1723
    %v2114 = vunpack.c.h.b16 %v1723
    %v2115 = vunpack.c.l.b16 %v1724
    %v2116 = vunpack.c.h.b16 %v1724
    %v2117 = vunpack.c.l.b16 %v1725
    %v2118 = vunpack.c.h.b16 %v1725
    %v2119 = vunpack.c.l.b16 %v1726
    %v2120 = vunpack.c.h.b16 %v1726
    %v2121 = vunpack.c.l.b16 %v1727
    %v2122 = vunpack.c.h.b16 %v1727
    %v2123 = vunpack.c.l.b16 %v1728
    %v2124 = vunpack.c.h.b16 %v1728
    %v2125 = vunpack.c.l.b16 %v1729
    %v2126 = vunpack.c.h.b16 %v1729
    %v2127 = vunpack.c.l.b16 %v1730
    %v2128 = vunpack.c.h.b16 %v1730
    %v2129 = vunpack.c.l.b16 %v1731
    %v2130 = vunpack.c.h.b16 %v1731
    %v2131 = vunpack.c.l.b16 %v1732
    %v2132 = vunpack.c.h.b16 %v1732
    %v2133 = vunpack.c.l.b16 %v1733
    %v2134 = vunpack.c.h.b16 %v1733
    %v2135 = vunpack.c.l.b16 %v1734
    %v2136 = vunpack.c.h.b16 %v1734
    %v2137 = vunpack.c.l.b16 %v1735
    %v2138 = vunpack.c.h.b16 %v1735
    %v2139 = vunpack.c.l.b16 %v1736
    %v2140 = vunpack.c.h.b16 %v1736
    %v2141 = vunpack.c.l.b16 %v1737
    %v2142 = vunpack.c.h.b16 %v1737
    %v2143 = vunpack.c.l.b16 %v1738
    %v2144 = vunpack.c.h.b16 %v1738
    %v2145 = vpack.c.b16 %v1893, %v1889
    %v2146 = vpack.c.b16 %v1894, %v1890
    %v2147 = vpack.c.b16 %v1895, %v1891
    %v2148 = vpack.c.b16 %v1896, %v1892
    %v2149 = vpack.c.b16 %v1901, %v1897
    %v2150 = vpack.c.b16 %v1902, %v1898
    %v2151 = vpack.c.b16 %v1903, %v1899
    %v2152 = vpack.c.b16 %v1904, %v1900
    %v2153 = vpack.c.b16 %v1909, %v1905
    %v2154 = vpack.c.b16 %v1910, %v1906
    %v2155 = vpack.c.b16 %v1911, %v1907
    %v2156 = vpack.c.b16 %v1912, %v1908
    %v2157 = vpack.c.b16 %v1917, %v1913
    %v2158 = vpack.c.b16 %v1918, %v1914
    %v2159 = vpack.c.b16 %v1919, %v1915
    %v2160 = vpack.c.b16 %v1920, %v1916
    %v2161 = vpack.c.b16 %v1925, %v1921
    %v2162 = vpack.c.b16 %v1926, %v1922
    %v2163 = vpack.c.b16 %v1927, %v1923
    %v2164 = vpack.c.b16 %v1928, %v1924
    %v2165 = vpack.c.b16 %v1933, %v1929
    %v2166 = vpack.c.b16 %v1934, %v1930
    %v2167 = vpack.c.b16 %v1935, %v1931
    %v2168 = vpack.c.b16 %v1936, %v1932
    %v2169 = vpack.c.b16 %v1941, %v1937
    %v2170 = vpack.c.b16 %v1942, %v1938
    %v2171 = vpack.c.b16 %v1943, %v1939
    %v2172 = vpack.c.b16 %v1944, %v1940
    %v2173 = vpack.c.b16 %v1949, %v1945
    %v2174 = vpack.c.b16 %v1950, %v1946
    %v2175 = vpack.c.b16 %v1951, %v1947
    %v2176 = vpack.c.b16 %v1952, %v1948
    %v2177 = vpack.c.b16 %v1957, %v1953
    %v2178 = vpack.c.b16 %v1958, %v1954
    %v2179 = vpack.c.b16 %v1959, %v1955
    %v2180 = vpack.c.b16 %v1960, %v1956
    %v2181 = vpack.c.b16 %v1965, %v1961
    %v2182 = vpack.c.b16 %v1966, %v1962
    %v2183 = vpack.c.b16 %v1967, %v1963
    %v2184 = vpack.c.b16 %v1968, %v1964
    %v2185 = vpack.c.b16 %v1973, %v1969
    %v2186 = vpack.c.b16 %v1974, %v1970
    %v2187 = vpack.c.b16 %v1975, %v1971
    %v2188 = vpack.c.b16 %v1976, %v1972
    %v2189 = vpack.c.b16 %v1981, %v1977
    %v2190 = vpack.c.b16 %v1982, %v1978
    %v2191 = vpack.c.b16 %v1983, %v1979
    %v2192 = vpack.c.b16 %v1984, %v1980
    %v2193 = vpack.c.b16 %v1989, %v1985
    %v2194 = vpack.c.b16 %v1990, %v1986
    %v2195 = vpack.c.b16 %v1991, %v1987
    %v2196 = vpack.c.b16 %v1992, %v1988
    %v2197 = vpack.c.b16 %v1997, %v1993
    %v2198 = vpack.c.b16 %v1998, %v1994
    %v2199 = vpack.c.b16 %v1999, %v1995
    %v2200 = vpack.c.b16 %v2000, %v1996
    %v2201 = vpack.c.b16 %v2005, %v2001
    %v2202 = vpack.c.b16 %v2006, %v2002
    %v2203 = vpack.c.b16 %v2007, %v2003
    %v2204 = vpack.c.b16 %v2008, %v2004
    %v2205 = vpack.c.b16 %v2013, %v2009
    %v2206 = vpack.c.b16 %v2014, %v2010
    %v2207 = vpack.c.b16 %v2015, %v2011
    %v2208 = vpack.c.b16 %v2016, %v2012
    %v2209 = vpack.c.b16 %v2021, %v2017
    %v2210 = vpack.c.b16 %v2022, %v2018
    %v2211 = vpack.c.b16 %v2023, %v2019
    %v2212 = vpack.c.b16 %v2024, %v2020
    %v2213 = vpack.c.b16 %v2029, %v2025
    %v2214 = vpack.c.b16 %v2030, %v2026
    %v2215 = vpack.c.b16 %v2031, %v2027
    %v2216 = vpack.c.b16 %v2032, %v2028
    %v2217 = vpack.c.b16 %v2037, %v2033
    %v2218 = vpack.c.b16 %v2038, %v2034
    %v2219 = vpack.c.b16 %v2039, %v2035
    %v2220 = vpack.c.b16 %v2040, %v2036
    %v2221 = vpack.c.b16 %v2045, %v2041
    %v2222 = vpack.c.b16 %v2046, %v2042
    %v2223 = vpack.c.b16 %v2047, %v2043
    %v2224 = vpack.c.b16 %v2048, %v2044
    %v2225 = vpack.c.b16 %v2053, %v2049
    %v2226 = vpack.c.b16 %v2054, %v2050
    %v2227 = vpack.c.b16 %v2055, %v2051
    %v2228 = vpack.c.b16 %v2056, %v2052
    %v2229 = vpack.c.b16 %v2061, %v2057
    %v2230 = vpack.c.b16 %v2062, %v2058
    %v2231 = vpack.c.b16 %v2063, %v2059
    %v2232 = vpack.c.b16 %v2064, %v2060
    %v2233 = vpack.c.b16 %v2069, %v2065
    %v2234 = vpack.c.b16 %v2070, %v2066
    %v2235 = vpack.c.b16 %v2071, %v2067
    %v2236 = vpack.c.b16 %v2072, %v2068
    %v2237 = vpack.c.b16 %v2077, %v2073
    %v2238 = vpack.c.b16 %v2078, %v2074
    %v2239 = vpack.c.b16 %v2079, %v2075
    %v2240 = vpack.c.b16 %v2080, %v2076
    %v2241 = vpack.c.b16 %v2085, %v2081
    %v2242 = vpack.c.b16 %v2086, %v2082
    %v2243 = vpack.c.b16 %v2087, %v2083
    %v2244 = vpack.c.b16 %v2088, %v2084
    %v2245 = vpack.c.b16 %v2093, %v2089
    %v2246 = vpack.c.b16 %v2094, %v2090
    %v2247 = vpack.c.b16 %v2095, %v2091
    %v2248 = vpack.c.b16 %v2096, %v2092
    %v2249 = vpack.c.b16 %v2101, %v2097
    %v2250 = vpack.c.b16 %v2102, %v2098
    %v2251 = vpack.c.b16 %v2103, %v2099
    %v2252 = vpack.c.b16 %v2104, %v2100
    %v2253 = vpack.c.b16 %v2109, %v2105
    %v2254 = vpack.c.b16 %v2110, %v2106
    %v2255 = vpack.c.b16 %v2111, %v2107
    %v2256 = vpack.c.b16 %v2112, %v2108
    %v2257 = vpack.c.b16 %v2117, %v2113
    %v2258 = vpack.c.b16 %v2118, %v2114
    %v2259 = vpack.c.b16 %v2119, %v2115
    %v2260 = vpack.c.b16 %v2120, %v2116
    %v2261 = vpack.c.b16 %v2125, %v2121
    %v2262 = vpack.c.b16 %v2126, %v2122
    %v2263 = vpack.c.b16 %v2127, %v2123
    %v2264 = vpack.c.b16 %v2128, %v2124
    %v2265 = vpack.c.b16 %v2133, %v2129
    %v2266 = vpack.c.b16 %v2134, %v2130
    %v2267 = vpack.c.b16 %v2135, %v2131
    %v2268 = vpack.c.b16 %v2136, %v2132
    %v2269 = vpack.c.b16 %v2141, %v2137
    %v2270 = vpack.c.b16 %v2142, %v2138
    %v2271 = vpack.c.b16 %v2143, %v2139
    %v2272 = vpack.c.b16 %v2144, %v2140
    %2401 = vmatprep.subr.bf16.mxu0 %v2174
    %2402 = vmatpush1.bf16.msra.mxu0 %v2173
    %2403 = vmatprep.subr.bf16.mxu0 %v2170
    %2404 = vmatpush1.bf16.msra.mxu0 %v2169
    %2405 = vmatprep.subr.bf16.mxu0 %v2166
    %2406 = vmatpush1.bf16.msra.mxu0 %v2165
    %2407 = vmatprep.subr.bf16.mxu0 %v2162
    %2408 = vmatpush1.bf16.msra.mxu0 %v2161
    %2409 = vmatprep.subr.bf16.mxu0 %v2158
    %2410 = vmatpush1.bf16.msra.mxu0 %v2157
    %2411 = vmatprep.subr.bf16.mxu0 %v2154
    %2412 = vmatpush1.bf16.msra.mxu0 %v2153
    %2413 = vmatprep.subr.bf16.mxu0 %v2150
    %2414 = vmatpush1.bf16.msra.mxu0 %v2149
    %2415 = vmatprep.subr.bf16.mxu0 %v2146
    %2416 = vmatpush1.bf16.msra.mxu0 %v2145
    %2417 = vmatprep.subr.bf16.mxu0 %v2206
    %2418 = vmatpush2.bf16.msra.mxu0 %v2205
    %2419 = vmatprep.subr.bf16.mxu0 %v2202
    %2420 = vmatpush2.bf16.msra.mxu0 %v2201
    %2421 = vmatprep.subr.bf16.mxu0 %v2198
    %2422 = vmatpush2.bf16.msra.mxu0 %v2197
    %2423 = vmatprep.subr.bf16.mxu0 %v2194
    %2424 = vmatpush2.bf16.msra.mxu0 %v2193
    %2425 = vmatprep.subr.bf16.mxu0 %v2190
    %2426 = vmatpush2.bf16.msra.mxu0 %v2189
    %2427 = vmatprep.subr.bf16.mxu0 %v2186
    %2428 = vmatpush2.bf16.msra.mxu0 %v2185
    %2429 = vmatprep.subr.bf16.mxu0 %v2182
    %2430 = vmatpush2.bf16.msra.mxu0 %v2181
    %2431 = vmatprep.subr.bf16.mxu0 %v2178
    %2432 = vmatpush2.bf16.msra.mxu0 %v2177
    %2433 = vmatprep.mubr.bf16.mxu0 %v1608
    %2434 = vmatmul.mubr.bf16.gmra.mxu0 %v1607
    %v2435 = vpop.f32.mrf.mxu0
    %v2436 = vadd.f32 %v1744, %v2435
    %v2437 = vpop.f32.mrf.mxu0
    %v2438 = vadd.f32 %v1748, %v2437
    %v2439 = vpop.f32.mrf.mxu0
    %v2440 = vpop.f32.mrf.mxu0
    %2441 = vdwg.mxu0
    %2442 = vmatprep.subr.bf16.mxu0 %v2238
    %2443 = vmatpush1.bf16.msra.mxu0 %v2237
    %2444 = vmatprep.subr.bf16.mxu0 %v2234
    %2445 = vmatpush1.bf16.msra.mxu0 %v2233
    %2446 = vmatprep.subr.bf16.mxu0 %v2230
    %2447 = vmatpush1.bf16.msra.mxu0 %v2229
    %2448 = vmatprep.subr.bf16.mxu0 %v2226
    %2449 = vmatpush1.bf16.msra.mxu0 %v2225
    %2450 = vmatprep.subr.bf16.mxu0 %v2222
    %2451 = vmatpush1.bf16.msra.mxu0 %v2221
    %2452 = vmatprep.subr.bf16.mxu0 %v2218
    %2453 = vmatpush1.bf16.msra.mxu0 %v2217
    %2454 = vmatprep.subr.bf16.mxu0 %v2214
    %2455 = vmatpush1.bf16.msra.mxu0 %v2213
    %2456 = vmatprep.subr.bf16.mxu0 %v2210
    %2457 = vmatpush1.bf16.msra.mxu0 %v2209
    %2458 = vmatprep.subr.bf16.mxu0 %v2270
    %2459 = vmatpush2.bf16.msra.mxu0 %v2269
    %2460 = vmatprep.subr.bf16.mxu0 %v2266
    %2461 = vmatpush2.bf16.msra.mxu0 %v2265
    %2462 = vmatprep.subr.bf16.mxu0 %v2262
    %2463 = vmatpush2.bf16.msra.mxu0 %v2261
    %2464 = vmatprep.subr.bf16.mxu0 %v2258
    %2465 = vmatpush2.bf16.msra.mxu0 %v2257
    %2466 = vmatprep.subr.bf16.mxu0 %v2254
    %2467 = vmatpush2.bf16.msra.mxu0 %v2253
    %2468 = vmatprep.subr.bf16.mxu0 %v2250
    %2469 = vmatpush2.bf16.msra.mxu0 %v2249
    %2470 = vmatprep.subr.bf16.mxu0 %v2246
    %2471 = vmatpush2.bf16.msra.mxu0 %v2245
    %2472 = vmatprep.subr.bf16.mxu0 %v2242
    %2473 = vmatpush2.bf16.msra.mxu0 %v2241
    %2474 = vmatprep.mubr.bf16.mxu0 %v1610
    %2475 = vmatmul.mubr.bf16.gmra.mxu0 %v1609
    %v2476 = vpop.f32.mrf.mxu0
    %v2477 = vadd.f32 %v2436, %v2476
    %v2478 = vpop.f32.mrf.mxu0
    %v2479 = vadd.f32 %v2438, %v2478
    %v2480 = vpop.f32.mrf.mxu0
    %v2481 = vpop.f32.mrf.mxu0
    %2482 = vdwg.mxu0
    %2483 = vmatprep.subr.bf16.mxu0 %v2176
    %2484 = vmatpush1.bf16.msra.mxu0 %v2175
    %2485 = vmatprep.subr.bf16.mxu0 %v2172
    %2486 = vmatpush1.bf16.msra.mxu0 %v2171
    %2487 = vmatprep.subr.bf16.mxu0 %v2168
    %2488 = vmatpush1.bf16.msra.mxu0 %v2167
    %2489 = vmatprep.subr.bf16.mxu0 %v2164
    %2490 = vmatpush1.bf16.msra.mxu0 %v2163
    %2491 = vmatprep.subr.bf16.mxu0 %v2160
    %2492 = vmatpush1.bf16.msra.mxu0 %v2159
    %2493 = vmatprep.subr.bf16.mxu0 %v2156
    %2494 = vmatpush1.bf16.msra.mxu0 %v2155
    %2495 = vmatprep.subr.bf16.mxu0 %v2152
    %2496 = vmatpush1.bf16.msra.mxu0 %v2151
    %2497 = vmatprep.subr.bf16.mxu0 %v2148
    %2498 = vmatpush1.bf16.msra.mxu0 %v2147
    %2499 = vmatprep.subr.bf16.mxu0 %v2208
    %2500 = vmatpush2.bf16.msra.mxu0 %v2207
    %2501 = vmatprep.subr.bf16.mxu0 %v2204
    %2502 = vmatpush2.bf16.msra.mxu0 %v2203
    %2503 = vmatprep.subr.bf16.mxu0 %v2200
    %2504 = vmatpush2.bf16.msra.mxu0 %v2199
    %2505 = vmatprep.subr.bf16.mxu0 %v2196
    %2506 = vmatpush2.bf16.msra.mxu0 %v2195
    %2507 = vmatprep.subr.bf16.mxu0 %v2192
    %2508 = vmatpush2.bf16.msra.mxu0 %v2191
    %2509 = vmatprep.subr.bf16.mxu0 %v2188
    %2510 = vmatpush2.bf16.msra.mxu0 %v2187
    %2511 = vmatprep.subr.bf16.mxu0 %v2184
    %2512 = vmatpush2.bf16.msra.mxu0 %v2183
    %2513 = vmatprep.subr.bf16.mxu0 %v2180
    %2514 = vmatpush2.bf16.msra.mxu0 %v2179
    %2515 = vmatprep.mubr.bf16.mxu0 %v1608
    %2516 = vmatmul.mubr.bf16.gmra.mxu0 %v1607
    %v2517 = vpop.f32.mrf.mxu0
    %v2518 = vadd.f32 %v1752, %v2517
    %v2519 = vpop.f32.mrf.mxu0
    %v2520 = vadd.f32 %v1756, %v2519
    %v2521 = vpop.f32.mrf.mxu0
    %v2522 = vpop.f32.mrf.mxu0
    %2523 = vdwg.mxu0
    %2524 = vmatprep.subr.bf16.mxu0 %v2240
    %2525 = vmatpush1.bf16.msra.mxu0 %v2239
    %2526 = vmatprep.subr.bf16.mxu0 %v2236
    %2527 = vmatpush1.bf16.msra.mxu0 %v2235
    %2528 = vmatprep.subr.bf16.mxu0 %v2232
    %2529 = vmatpush1.bf16.msra.mxu0 %v2231
    %2530 = vmatprep.subr.bf16.mxu0 %v2228
    %2531 = vmatpush1.bf16.msra.mxu0 %v2227
    %2532 = vmatprep.subr.bf16.mxu0 %v2224
    %2533 = vmatpush1.bf16.msra.mxu0 %v2223
    %2534 = vmatprep.subr.bf16.mxu0 %v2220
    %2535 = vmatpush1.bf16.msra.mxu0 %v2219
    %2536 = vmatprep.subr.bf16.mxu0 %v2216
    %2537 = vmatpush1.bf16.msra.mxu0 %v2215
    %2538 = vmatprep.subr.bf16.mxu0 %v2212
    %2539 = vmatpush1.bf16.msra.mxu0 %v2211
    %2540 = vmatprep.subr.bf16.mxu0 %v2272
    %2541 = vmatpush2.bf16.msra.mxu0 %v2271
    %2542 = vmatprep.subr.bf16.mxu0 %v2268
    %2543 = vmatpush2.bf16.msra.mxu0 %v2267
    %2544 = vmatprep.subr.bf16.mxu0 %v2264
    %2545 = vmatpush2.bf16.msra.mxu0 %v2263
    %2546 = vmatprep.subr.bf16.mxu0 %v2260
    %2547 = vmatpush2.bf16.msra.mxu0 %v2259
    %2548 = vmatprep.subr.bf16.mxu0 %v2256
    %2549 = vmatpush2.bf16.msra.mxu0 %v2255
    %2550 = vmatprep.subr.bf16.mxu0 %v2252
    %2551 = vmatpush2.bf16.msra.mxu0 %v2251
    %2552 = vmatprep.subr.bf16.mxu0 %v2248
    %2553 = vmatpush2.bf16.msra.mxu0 %v2247
    %2554 = vmatprep.subr.bf16.mxu0 %v2244
    %2555 = vmatpush2.bf16.msra.mxu0 %v2243
    %2556 = vmatprep.mubr.bf16.mxu0 %v1610
    %2557 = vmatmul.mubr.bf16.gmra.mxu0 %v1609
    %v2558 = vpop.f32.mrf.mxu0
    %v2559 = vadd.f32 %v2518, %v2558
    %v2560 = vpop.f32.mrf.mxu0
    %v2561 = vadd.f32 %v2520, %v2560
    %v2562 = vpop.f32.mrf.mxu0
    %v2563 = vpop.f32.mrf.mxu0
    %2564 = vdwg.mxu0
    %v2565 = vmax.f32 %v2477, 0.0
    %v2566 = vmax.f32 %v2479, 0.0
    %v2567 = vmax.f32 %v2559, 0.0
    %v2568 = vmax.f32 %v2561, 0.0
    %v2569 = vpack.c.bf16 %v2565, %v2565
    %v2570 = vpack.c.bf16 %v2566, %v2566
    %v2571 = vpack.c.bf16 %v2567, %v2567
    %v2572 = vpack.c.bf16 %v2568, %v2568
    %v2573 = vld [vmem:[#allocation12] sm:$0xff]
    %v2574 = vld [vmem:[#allocation12 + $0x8] sm:$0xff]
    %v2575 = vld [vmem:[#allocation12 + $0x10] sm:$0xff]
    %v2576 = vld [vmem:[#allocation12 + $0x18] sm:$0xff]
    %v2577 = vld [vmem:[#allocation12 + $0x20] sm:$0xff]
    %v2578 = vld [vmem:[#allocation12 + $0x28] sm:$0xff]
    %v2579 = vld [vmem:[#allocation12 + $0x30] sm:$0xff]
    %v2580 = vld [vmem:[#allocation12 + $0x38] sm:$0xff]
    %v2581 = vld [vmem:[#allocation12 + $0x40] sm:$0xff]
    %v2582 = vld [vmem:[#allocation12 + $0x48] sm:$0xff]
    %v2583 = vld [vmem:[#allocation12 + $0x50] sm:$0xff]
    %v2584 = vld [vmem:[#allocation12 + $0x58] sm:$0xff]
    %v2585 = vld [vmem:[#allocation12 + $0x60] sm:$0xff]
    %v2586 = vld [vmem:[#allocation12 + $0x68] sm:$0xff]
    %v2587 = vld [vmem:[#allocation12 + $0x70] sm:$0xff]
    %v2588 = vld [vmem:[#allocation12 + $0x78] sm:$0xff]
    %v2589 = vld [vmem:[#allocation12 + $0x80] sm:$0xff]
    %v2590 = vld [vmem:[#allocation12 + $0x88] sm:$0xff]
    %v2591 = vld [vmem:[#allocation12 + $0x90] sm:$0xff]
    %v2592 = vld [vmem:[#allocation12 + $0x98] sm:$0xff]
    %v2593 = vld [vmem:[#allocation12 + $0xa0] sm:$0xff]
    %v2594 = vld [vmem:[#allocation12 + $0xa8] sm:$0xff]
    %v2595 = vld [vmem:[#allocation12 + $0xb0] sm:$0xff]
    %v2596 = vld [vmem:[#allocation12 + $0xb8] sm:$0xff]
    %v2597 = vld [vmem:[#allocation12 + $0xc0] sm:$0xff]
    %v2598 = vld [vmem:[#allocation12 + $0xc8] sm:$0xff]
    %v2599 = vld [vmem:[#allocation12 + $0xd0] sm:$0xff]
    %v2600 = vld [vmem:[#allocation12 + $0xd8] sm:$0xff]
    %v2601 = vld [vmem:[#allocation12 + $0xe0] sm:$0xff]
    %v2602 = vld [vmem:[#allocation12 + $0xe8] sm:$0xff]
    %v2603 = vld [vmem:[#allocation12 + $0xf0] sm:$0xff]
    %v2604 = vld [vmem:[#allocation12 + $0xf8] sm:$0xff]
    %v2605 = vld [vmem:[#allocation12 + $0x100] sm:$0xff]
    %v2606 = vld [vmem:[#allocation12 + $0x108] sm:$0xff]
    %v2607 = vld [vmem:[#allocation12 + $0x110] sm:$0xff]
    %v2608 = vld [vmem:[#allocation12 + $0x118] sm:$0xff]
    %v2609 = vld [vmem:[#allocation12 + $0x120] sm:$0xff]
    %v2610 = vld [vmem:[#allocation12 + $0x128] sm:$0xff]
    %v2611 = vld [vmem:[#allocation12 + $0x130] sm:$0xff]
    %v2612 = vld [vmem:[#allocation12 + $0x138] sm:$0xff]
    %v2613 = vld [vmem:[#allocation12 + $0x140] sm:$0xff]
    %v2614 = vld [vmem:[#allocation12 + $0x148] sm:$0xff]
    %v2615 = vld [vmem:[#allocation12 + $0x150] sm:$0xff]
    %v2616 = vld [vmem:[#allocation12 + $0x158] sm:$0xff]
    %v2617 = vld [vmem:[#allocation12 + $0x160] sm:$0xff]
    %v2618 = vld [vmem:[#allocation12 + $0x168] sm:$0xff]
    %v2619 = vld [vmem:[#allocation12 + $0x170] sm:$0xff]
    %v2620 = vld [vmem:[#allocation12 + $0x178] sm:$0xff]
    %v2621 = vld [vmem:[#allocation12 + $0x180] sm:$0xff]
    %v2622 = vld [vmem:[#allocation12 + $0x188] sm:$0xff]
    %v2623 = vld [vmem:[#allocation12 + $0x190] sm:$0xff]
    %v2624 = vld [vmem:[#allocation12 + $0x198] sm:$0xff]
    %v2625 = vld [vmem:[#allocation12 + $0x1a0] sm:$0xff]
    %v2626 = vld [vmem:[#allocation12 + $0x1a8] sm:$0xff]
    %v2627 = vld [vmem:[#allocation12 + $0x1b0] sm:$0xff]
    %v2628 = vld [vmem:[#allocation12 + $0x1b8] sm:$0xff]
    %v2629 = vld [vmem:[#allocation12 + $0x1c0] sm:$0xff]
    %v2630 = vld [vmem:[#allocation12 + $0x1c8] sm:$0xff]
    %v2631 = vld [vmem:[#allocation12 + $0x1d0] sm:$0xff]
    %v2632 = vld [vmem:[#allocation12 + $0x1d8] sm:$0xff]
    %v2633 = vld [vmem:[#allocation12 + $0x1e0] sm:$0xff]
    %v2634 = vld [vmem:[#allocation12 + $0x1e8] sm:$0xff]
    %v2635 = vld [vmem:[#allocation12 + $0x1f0] sm:$0xff]
    %v2636 = vld [vmem:[#allocation12 + $0x1f8] sm:$0xff]
    %v2637 = vld [vmem:[%s9] sm:$0x3]
    %v2639 = vlaneseq
    %v2640 = vshrl.u32 %v2639, 7
    %v2641 = vsub.s32 0, %v2640
    %v2642 = vrot.slane %v2637, %v2641
    %v2643 = vlaneseq
    %v2644 = vshrl.u32 %v2643, 7
    %v2645 = vsub.s32 1, %v2644
    %v2646 = vrot.slane %v2637, %v2645
    %v2713 = vunpack.c.l.b16 %v2573
    %v2714 = vunpack.c.h.b16 %v2573
    %v2715 = vunpack.c.l.b16 %v2574
    %v2716 = vunpack.c.h.b16 %v2574
    %v2717 = vunpack.c.l.b16 %v2575
    %v2718 = vunpack.c.h.b16 %v2575
    %v2719 = vunpack.c.l.b16 %v2576
    %v2720 = vunpack.c.h.b16 %v2576
    %v2721 = vunpack.c.l.b16 %v2577
    %v2722 = vunpack.c.h.b16 %v2577
    %v2723 = vunpack.c.l.b16 %v2578
    %v2724 = vunpack.c.h.b16 %v2578
    %v2725 = vunpack.c.l.b16 %v2579
    %v2726 = vunpack.c.h.b16 %v2579
    %v2727 = vunpack.c.l.b16 %v2580
    %v2728 = vunpack.c.h.b16 %v2580
    %v2729 = vunpack.c.l.b16 %v2581
    %v2730 = vunpack.c.h.b16 %v2581
    %v2731 = vunpack.c.l.b16 %v2582
    %v2732 = vunpack.c.h.b16 %v2582
    %v2733 = vunpack.c.l.b16 %v2583
    %v2734 = vunpack.c.h.b16 %v2583
    %v2735 = vunpack.c.l.b16 %v2584
    %v2736 = vunpack.c.h.b16 %v2584
    %v2737 = vunpack.c.l.b16 %v2585
    %v2738 = vunpack.c.h.b16 %v2585
    %v2739 = vunpack.c.l.b16 %v2586
    %v2740 = vunpack.c.h.b16 %v2586
    %v2741 = vunpack.c.l.b16 %v2587
    %v2742 = vunpack.c.h.b16 %v2587
    %v2743 = vunpack.c.l.b16 %v2588
    %v2744 = vunpack.c.h.b16 %v2588
    %v2745 = vunpack.c.l.b16 %v2589
    %v2746 = vunpack.c.h.b16 %v2589
    %v2747 = vunpack.c.l.b16 %v2590
    %v2748 = vunpack.c.h.b16 %v2590
    %v2749 = vunpack.c.l.b16 %v2591
    %v2750 = vunpack.c.h.b16 %v2591
    %v2751 = vunpack.c.l.b16 %v2592
    %v2752 = vunpack.c.h.b16 %v2592
    %v2753 = vunpack.c.l.b16 %v2593
    %v2754 = vunpack.c.h.b16 %v2593
    %v2755 = vunpack.c.l.b16 %v2594
    %v2756 = vunpack.c.h.b16 %v2594
    %v2757 = vunpack.c.l.b16 %v2595
    %v2758 = vunpack.c.h.b16 %v2595
    %v2759 = vunpack.c.l.b16 %v2596
    %v2760 = vunpack.c.h.b16 %v2596
    %v2761 = vunpack.c.l.b16 %v2597
    %v2762 = vunpack.c.h.b16 %v2597
    %v2763 = vunpack.c.l.b16 %v2598
    %v2764 = vunpack.c.h.b16 %v2598
    %v2765 = vunpack.c.l.b16 %v2599
    %v2766 = vunpack.c.h.b16 %v2599
    %v2767 = vunpack.c.l.b16 %v2600
    %v2768 = vunpack.c.h.b16 %v2600
    %v2769 = vunpack.c.l.b16 %v2601
    %v2770 = vunpack.c.h.b16 %v2601
    %v2771 = vunpack.c.l.b16 %v2602
    %v2772 = vunpack.c.h.b16 %v2602
    %v2773 = vunpack.c.l.b16 %v2603
    %v2774 = vunpack.c.h.b16 %v2603
    %v2775 = vunpack.c.l.b16 %v2604
    %v2776 = vunpack.c.h.b16 %v2604
    %v2777 = vunpack.c.l.b16 %v2605
    %v2778 = vunpack.c.h.b16 %v2605
    %v2779 = vunpack.c.l.b16 %v2606
    %v2780 = vunpack.c.h.b16 %v2606
    %v2781 = vunpack.c.l.b16 %v2607
    %v2782 = vunpack.c.h.b16 %v2607
    %v2783 = vunpack.c.l.b16 %v2608
    %v2784 = vunpack.c.h.b16 %v2608
    %v2785 = vunpack.c.l.b16 %v2609
    %v2786 = vunpack.c.h.b16 %v2609
    %v2787 = vunpack.c.l.b16 %v2610
    %v2788 = vunpack.c.h.b16 %v2610
    %v2789 = vunpack.c.l.b16 %v2611
    %v2790 = vunpack.c.h.b16 %v2611
    %v2791 = vunpack.c.l.b16 %v2612
    %v2792 = vunpack.c.h.b16 %v2612
    %v2793 = vunpack.c.l.b16 %v2613
    %v2794 = vunpack.c.h.b16 %v2613
    %v2795 = vunpack.c.l.b16 %v2614
    %v2796 = vunpack.c.h.b16 %v2614
    %v2797 = vunpack.c.l.b16 %v2615
    %v2798 = vunpack.c.h.b16 %v2615
    %v2799 = vunpack.c.l.b16 %v2616
    %v2800 = vunpack.c.h.b16 %v2616
    %v2801 = vunpack.c.l.b16 %v2617
    %v2802 = vunpack.c.h.b16 %v2617
    %v2803 = vunpack.c.l.b16 %v2618
    %v2804 = vunpack.c.h.b16 %v2618
    %v2805 = vunpack.c.l.b16 %v2619
    %v2806 = vunpack.c.h.b16 %v2619
    %v2807 = vunpack.c.l.b16 %v2620
    %v2808 = vunpack.c.h.b16 %v2620
    %v2809 = vunpack.c.l.b16 %v2621
    %v2810 = vunpack.c.h.b16 %v2621
    %v2811 = vunpack.c.l.b16 %v2622
    %v2812 = vunpack.c.h.b16 %v2622
    %v2813 = vunpack.c.l.b16 %v2623
    %v2814 = vunpack.c.h.b16 %v2623
    %v2815 = vunpack.c.l.b16 %v2624
    %v2816 = vunpack.c.h.b16 %v2624
    %v2817 = vunpack.c.l.b16 %v2625
    %v2818 = vunpack.c.h.b16 %v2625
    %v2819 = vunpack.c.l.b16 %v2626
    %v2820 = vunpack.c.h.b16 %v2626
    %v2821 = vunpack.c.l.b16 %v2627
    %v2822 = vunpack.c.h.b16 %v2627
    %v2823 = vunpack.c.l.b16 %v2628
    %v2824 = vunpack.c.h.b16 %v2628
    %v2825 = vunpack.c.l.b16 %v2629
    %v2826 = vunpack.c.h.b16 %v2629
    %v2827 = vunpack.c.l.b16 %v2630
    %v2828 = vunpack.c.h.b16 %v2630
    %v2829 = vunpack.c.l.b16 %v2631
    %v2830 = vunpack.c.h.b16 %v2631
    %v2831 = vunpack.c.l.b16 %v2632
    %v2832 = vunpack.c.h.b16 %v2632
    %v2833 = vunpack.c.l.b16 %v2633
    %v2834 = vunpack.c.h.b16 %v2633
    %v2835 = vunpack.c.l.b16 %v2634
    %v2836 = vunpack.c.h.b16 %v2634
    %v2837 = vunpack.c.l.b16 %v2635
    %v2838 = vunpack.c.h.b16 %v2635
    %v2839 = vunpack.c.l.b16 %v2636
    %v2840 = vunpack.c.h.b16 %v2636
    %v2841 = vpack.c.b16 %v2715, %v2713
    %v2842 = vpack.c.b16 %v2716, %v2714
    %v2843 = vpack.c.b16 %v2719, %v2717
    %v2844 = vpack.c.b16 %v2720, %v2718
    %v2845 = vpack.c.b16 %v2723, %v2721
    %v2846 = vpack.c.b16 %v2724, %v2722
    %v2847 = vpack.c.b16 %v2727, %v2725
    %v2848 = vpack.c.b16 %v2728, %v2726
    %v2849 = vpack.c.b16 %v2731, %v2729
    %v2850 = vpack.c.b16 %v2732, %v2730
    %v2851 = vpack.c.b16 %v2735, %v2733
    %v2852 = vpack.c.b16 %v2736, %v2734
    %v2853 = vpack.c.b16 %v2739, %v2737
    %v2854 = vpack.c.b16 %v2740, %v2738
    %v2855 = vpack.c.b16 %v2743, %v2741
    %v2856 = vpack.c.b16 %v2744, %v2742
    %v2857 = vpack.c.b16 %v2747, %v2745
    %v2858 = vpack.c.b16 %v2748, %v2746
    %v2859 = vpack.c.b16 %v2751, %v2749
    %v2860 = vpack.c.b16 %v2752, %v2750
    %v2861 = vpack.c.b16 %v2755, %v2753
    %v2862 = vpack.c.b16 %v2756, %v2754
    %v2863 = vpack.c.b16 %v2759, %v2757
    %v2864 = vpack.c.b16 %v2760, %v2758
    %v2865 = vpack.c.b16 %v2763, %v2761
    %v2866 = vpack.c.b16 %v2764, %v2762
    %v2867 = vpack.c.b16 %v2767, %v2765
    %v2868 = vpack.c.b16 %v2768, %v2766
    %v2869 = vpack.c.b16 %v2771, %v2769
    %v2870 = vpack.c.b16 %v2772, %v2770
    %v2871 = vpack.c.b16 %v2775, %v2773
    %v2872 = vpack.c.b16 %v2776, %v2774
    %v2873 = vpack.c.b16 %v2779, %v2777
    %v2874 = vpack.c.b16 %v2780, %v2778
    %v2875 = vpack.c.b16 %v2783, %v2781
    %v2876 = vpack.c.b16 %v2784, %v2782
    %v2877 = vpack.c.b16 %v2787, %v2785
    %v2878 = vpack.c.b16 %v2788, %v2786
    %v2879 = vpack.c.b16 %v2791, %v2789
    %v2880 = vpack.c.b16 %v2792, %v2790
    %v2881 = vpack.c.b16 %v2795, %v2793
    %v2882 = vpack.c.b16 %v2796, %v2794
    %v2883 = vpack.c.b16 %v2799, %v2797
    %v2884 = vpack.c.b16 %v2800, %v2798
    %v2885 = vpack.c.b16 %v2803, %v2801
    %v2886 = vpack.c.b16 %v2804, %v2802
    %v2887 = vpack.c.b16 %v2807, %v2805
    %v2888 = vpack.c.b16 %v2808, %v2806
    %v2889 = vpack.c.b16 %v2811, %v2809
    %v2890 = vpack.c.b16 %v2812, %v2810
    %v2891 = vpack.c.b16 %v2815, %v2813
    %v2892 = vpack.c.b16 %v2816, %v2814
    %v2893 = vpack.c.b16 %v2819, %v2817
    %v2894 = vpack.c.b16 %v2820, %v2818
    %v2895 = vpack.c.b16 %v2823, %v2821
    %v2896 = vpack.c.b16 %v2824, %v2822
    %v2897 = vpack.c.b16 %v2827, %v2825
    %v2898 = vpack.c.b16 %v2828, %v2826
    %v2899 = vpack.c.b16 %v2831, %v2829
    %v2900 = vpack.c.b16 %v2832, %v2830
    %v2901 = vpack.c.b16 %v2835, %v2833
    %v2902 = vpack.c.b16 %v2836, %v2834
    %v2903 = vpack.c.b16 %v2839, %v2837
    %v2904 = vpack.c.b16 %v2840, %v2838
    %2969 = vmatprep.subr.bf16.mxu0 %v2856
    %2970 = vmatpush1.bf16.msra.mxu0 %v2855
    %2971 = vmatprep.subr.bf16.mxu0 %v2854
    %2972 = vmatpush1.bf16.msra.mxu0 %v2853
    %2973 = vmatprep.subr.bf16.mxu0 %v2852
    %2974 = vmatpush1.bf16.msra.mxu0 %v2851
    %2975 = vmatprep.subr.bf16.mxu0 %v2850
    %2976 = vmatpush1.bf16.msra.mxu0 %v2849
    %2977 = vmatprep.subr.bf16.mxu0 %v2848
    %2978 = vmatpush1.bf16.msra.mxu0 %v2847
    %2979 = vmatprep.subr.bf16.mxu0 %v2846
    %2980 = vmatpush1.bf16.msra.mxu0 %v2845
    %2981 = vmatprep.subr.bf16.mxu0 %v2844
    %2982 = vmatpush1.bf16.msra.mxu0 %v2843
    %2983 = vmatprep.subr.bf16.mxu0 %v2842
    %2984 = vmatpush1.bf16.msra.mxu0 %v2841
    %2985 = vmatprep.subr.bf16.mxu0 %v2872
    %2986 = vmatpush2.bf16.msra.mxu0 %v2871
    %2987 = vmatprep.subr.bf16.mxu0 %v2870
    %2988 = vmatpush2.bf16.msra.mxu0 %v2869
    %2989 = vmatprep.subr.bf16.mxu0 %v2868
    %2990 = vmatpush2.bf16.msra.mxu0 %v2867
    %2991 = vmatprep.subr.bf16.mxu0 %v2866
    %2992 = vmatpush2.bf16.msra.mxu0 %v2865
    %2993 = vmatprep.subr.bf16.mxu0 %v2864
    %2994 = vmatpush2.bf16.msra.mxu0 %v2863
    %2995 = vmatprep.subr.bf16.mxu0 %v2862
    %2996 = vmatpush2.bf16.msra.mxu0 %v2861
    %2997 = vmatprep.subr.bf16.mxu0 %v2860
    %2998 = vmatpush2.bf16.msra.mxu0 %v2859
    %2999 = vmatprep.subr.bf16.mxu0 %v2858
    %3000 = vmatpush2.bf16.msra.mxu0 %v2857
    %3001 = vmatprep.mubr.bf16.mxu0 %v2570
    %3002 = vmatmul.mubr.bf16.gmra.mxu0 %v2569
    %v3003 = vpop.f32.mrf.mxu0
    %v3004 = vadd.f32 %v2642, %v3003
    %v3005 = vpop.f32.mrf.mxu0
    %v3006 = vadd.f32 %v2646, %v3005
    %v3007 = vpop.f32.mrf.mxu0
    %v3008 = vpop.f32.mrf.mxu0
    %3009 = vdwg.mxu0
    %3010 = vmatprep.subr.bf16.mxu0 %v2888
    %3011 = vmatpush1.bf16.msra.mxu0 %v2887
    %3012 = vmatprep.subr.bf16.mxu0 %v2886
    %3013 = vmatpush1.bf16.msra.mxu0 %v2885
    %3014 = vmatprep.subr.bf16.mxu0 %v2884
    %3015 = vmatpush1.bf16.msra.mxu0 %v2883
    %3016 = vmatprep.subr.bf16.mxu0 %v2882
    %3017 = vmatpush1.bf16.msra.mxu0 %v2881
    %3018 = vmatprep.subr.bf16.mxu0 %v2880
    %3019 = vmatpush1.bf16.msra.mxu0 %v2879
    %3020 = vmatprep.subr.bf16.mxu0 %v2878
    %3021 = vmatpush1.bf16.msra.mxu0 %v2877
    %3022 = vmatprep.subr.bf16.mxu0 %v2876
    %3023 = vmatpush1.bf16.msra.mxu0 %v2875
    %3024 = vmatprep.subr.bf16.mxu0 %v2874
    %3025 = vmatpush1.bf16.msra.mxu0 %v2873
    %3026 = vmatprep.subr.bf16.mxu0 %v2904
    %3027 = vmatpush2.bf16.msra.mxu0 %v2903
    %3028 = vmatprep.subr.bf16.mxu0 %v2902
    %3029 = vmatpush2.bf16.msra.mxu0 %v2901
    %3030 = vmatprep.subr.bf16.mxu0 %v2900
    %3031 = vmatpush2.bf16.msra.mxu0 %v2899
    %3032 = vmatprep.subr.bf16.mxu0 %v2898
    %3033 = vmatpush2.bf16.msra.mxu0 %v2897
    %3034 = vmatprep.subr.bf16.mxu0 %v2896
    %3035 = vmatpush2.bf16.msra.mxu0 %v2895
    %3036 = vmatprep.subr.bf16.mxu0 %v2894
    %3037 = vmatpush2.bf16.msra.mxu0 %v2893
    %3038 = vmatprep.subr.bf16.mxu0 %v2892
    %3039 = vmatpush2.bf16.msra.mxu0 %v2891
    %3040 = vmatprep.subr.bf16.mxu0 %v2890
    %3041 = vmatpush2.bf16.msra.mxu0 %v2889
    %3042 = vmatprep.mubr.bf16.mxu0 %v2572
    %3043 = vmatmul.mubr.bf16.gmra.mxu0 %v2571
    %v3044 = vpop.f32.mrf.mxu0
    %v3045 = vadd.f32 %v3004, %v3044
    %v3046 = vpop.f32.mrf.mxu0
    %v3047 = vadd.f32 %v3006, %v3046
    %v3048 = vpop.f32.mrf.mxu0
    %v3049 = vpop.f32.mrf.mxu0
    %3050 = vdwg.mxu0
    %v3051 = vmax.f32 %v3047, 0.0
    %v3052 = vand.u32 2147483647, %v3047
    %v3053 = vsub.f32 0.0, %v3052
    %v3054 = vmul.f32 %v3053, 1.442695
    %v3055 = vpow.pop %v3054
    %v3056 = vadd.f32 %v3055, 1.0
    %v3057 = vlog2.pop %v3056
    %v3058 = vmul.f32 %v3057, 0.6931472
    %v3059 = vmul.f32 -0.5, %v3055
    %v3060 = vadd.f32 %v3059, 1.0
    %v3061 = vmul.f32 %v3060, %v3055
    %v3062 = vand.u32 2147483647, %v3055
    %vm3063 = vcmp.lt.f32.partialorder %v3062, 0.0004427343
    %v3064 = vsel %vm3063, %v3061, %v3058
    %v3065 = vadd.f32 %v3051, %v3064
    %v3066 = vadd.f32 %v3065, 1e-06
    %v3067 = vadd.f32 %v1602, %v3066
    %v3068 = vmul.f32 %v3067, 0.5
    %v3069 = vsub.f32 %v1581, %v3045
    %v3070 = vmul.f32 %v3069, 0.5
    %v3071 = vmul.f32 %v3068, %v3068
    %v3072 = vrcp.pop %v3071
    %v3073 = vmul.f32 %v1602, %v3066
    %v3074 = vrcp.pop %v3073
    %v3075 = vmul.f32 %v3071, %v3074
    %v3076 = vlog2.pop %v3075
    %v3077 = vmul.f32 %v3076, 0.6931472
    %v3078 = vmul.f32 %v1602, %v1602
    %v3079 = vmul.f32 %v3066, %v3066
    %v3080 = vadd.f32 %v3078, %v3079
    %v3081 = vmul.f32 %v3070, %v3070
    %v3082 = vmul.f32 %v3081, 2.0
    %v3083 = vadd.f32 %v3080, %v3082
    %v3084 = vmul.f32 %v3083, %v3072
    %v3085 = vmul.f32 %v3077, 0.5
    %v3086 = vmul.f32 %v3084, 0.25
    %v3087 = vadd.f32 %v3085, %v3086
    %v3088 = vsub.f32 %v3087, 0.5
    %v3089 = vlaneseq
    %v3090 = vand.u32 %v3089, 127
    %vm3091 = vcmp.lt.s32.totalorder %v3090, 2
    %v3092 = vsel %vm3091, %v3088, 0.0
    %v3093 = vld [vmem:[%s10] sm:$0x1]
    %v3094 = vrot.slane %v3092, 4
    %v3095 = vadd.f32 %v3092, %v3094
    %v3096 = vrot.slane %v3095, 2
    %v3097 = vadd.f32 %v3095, %v3096
    %v3098 = vrot.slane %v3097, 1
    %v3099 = vadd.f32 %v3097, %v3098
    %v3100 = vadd.f32 %v3093, %v3099
    %3101 = vst [vmem:[%s10] sm:$0x1] %v3100
    // Predicated region
    $region74: #{ambiguity_js_forward.1} parent=1 // pred_check
      _
    $region75: #{ambiguity_js_forward.1} parent=1 // pred_check_branch
      %3103 = sbr.rel (0) target = $region77
    $region76: #{ambiguity_js_forward.1} parent=1 // pred_region
      _
    $region77: #{ambiguity_js_forward.1} parent=1 // pred_fallthru
      _
    // Predicated region
    $region78: #{ambiguity_js_forward.1} parent=1 // pred_check
      _
    $region79: #{ambiguity_js_forward.1} parent=1 // pred_check_branch
      %3105 = sbr.rel (0) target = $region81
    $region80: #{ambiguity_js_forward.1} parent=1 // pred_region
      _
    $region81: #{ambiguity_js_forward.1} parent=1 // pred_fallthru
      _
    %3106 = vsyncpa [#allocation3], 1
    %3107 = vsyncpa [#allocation5], 1
    %3108 = vsyncpa [#allocation8], 1
    %3109 = vsyncpa [#allocation11], 1

</llo_original>
